<compile_context>
chip_gen: v7x
topology: tpu7x:2x2x1
jax: 0.10.0
libtpu: 0.0.40
codegen_flags: <defaults>
</compile_context>

<pallas_src>
import functools

import jax
import jax.numpy as jnp
from jax.experimental import pallas as pl
from jax.experimental.pallas import tpu as pltpu


def _spp_kernel(x_ref, mask_ref, w1_ref, b1_ref,
                w2a_ref, w2b_ref, w2c_ref, w2d_ref, b2_ref,
                o_ref, *, W, HWp):
    x = x_ref[...]                                    # (C1, HWp)

    # --- cv1: 1x1 conv (BN scale folded into w1) + bias + SiLU ---
    # TODO(synk): at real channel counts (K~1024) default TPU f32 dot precision
    #             (multi-pass bf16) may drift past 1e-4 vs a HIGHEST-precision
    #             reference; acceptable for inference, documented here.
    y = jnp.dot(w1_ref[...], x, preferred_element_type=jnp.float32)
    y = y + b1_ref[...]
    y = y * jax.nn.sigmoid(y)                         # (c_, HWp) float32

    # Precomputed additive boundary masks: 0 where the shifted neighbour is
    # valid, -inf where it falls outside the HxW plane (or into the pad).
    mask = mask_ref[...]                              # (8, HWp) f32
    mw = tuple(mask[j:j + 1, :] for j in range(4))        # W-dir, d = -2,-1,1,2
    mh = tuple(mask[j + 4:j + 5, :] for j in range(4))    # H-dir, d = -2,-1,1,2
    d_offsets = (-2, -1, 1, 2)
    shifts_w = tuple((-d) % HWp for d in d_offsets)       # lane stride 1
    shifts_h = tuple((-d * W) % HWp for d in d_offsets)   # row stride W

    def pool5(v):
        # 5x5 max pool, stride 1, 'same' (-inf) padding, separable.
        # Each step = roll (XLU slot) + add + max (2 VALU ops per vreg).
        # The unshifted value seeds the accumulator, so no all--inf outputs.
        r = v
        for s, m in zip(shifts_w, mw):                # along W (lane direction)
            r = jnp.maximum(r, pltpu.roll(v, shift=s, axis=1) + m)
        out = r
        for s, m in zip(shifts_h, mh):                # along H (stride = W)
            out = jnp.maximum(out, pltpu.roll(r, shift=s, axis=1) + m)
        return out

    # --- cv2: split-K matmul interleaved with the pool chain (no concat copy;
    # only one pooled slab is live at a time alongside y and the accumulator) ---
    z = jnp.dot(w2a_ref[...], y, preferred_element_type=jnp.float32)
    m5 = pool5(y)                      # == MaxPool2d(5, 1, 2)
    z = z + jnp.dot(w2b_ref[...], m5, preferred_element_type=jnp.float32)
    m9 = pool5(m5)                     # == MaxPool2d(9, 1, 4)  (SPPF identity)
    z = z + jnp.dot(w2c_ref[...], m9, preferred_element_type=jnp.float32)
    m13 = pool5(m9)                    # == MaxPool2d(13, 1, 6)
    z = z + jnp.dot(w2d_ref[...], m13, preferred_element_type=jnp.float32)
    z = z + b2_ref[...]
    o_ref[...] = (z * jax.nn.sigmoid(z)).astype(o_ref.dtype)


def _pool_masks(H, W, HW, HWp):
    """(8, HWp) additive masks: rows 0-3 = W-shifts d=(-2,-1,1,2), 4-7 = H-shifts."""
    flat = jnp.arange(HWp, dtype=jnp.int32)
    col = flat % W
    row = flat // W
    inside = flat < HW
    rows = []
    for d in (-2, -1, 1, 2):           # shifts along W
        ok = inside & (col + d >= 0) & (col + d < W)
        rows.append(jnp.where(ok, 0.0, -jnp.inf))
    for d in (-2, -1, 1, 2):           # shifts along H
        ok = inside & (row + d >= 0) & (row + d < H)
        rows.append(jnp.where(ok, 0.0, -jnp.inf))
    return jnp.stack(rows, axis=0).astype(jnp.float32)


def spp_forward(x, w1, g1, be1, m1, v1, w2, g2, be2, m2, v2, *, eps=1e-5):
    """x: (N, C1, H, W) NCHW f32.  w1: (c_, C1, 1, 1).  w2: (c2, 4*c_, 1, 1)."""
    N, C1, H, W = x.shape
    c_ = w1.shape[0]
    c2 = w2.shape[0]
    HW = H * W
    HWp = ((HW + 127) // 128) * 128                  # lane-dense padded length

    # Fold BN (eval mode) into the conv weights: (W@x)*s + b == (W*s)@x + b.
    s1 = g1 / jnp.sqrt(v1 + eps)
    w1f = (w1.reshape(c_, C1) * s1[:, None]).astype(jnp.float32)
    b1f = (be1 - m1 * s1).reshape(c_, 1).astype(jnp.float32)

    s2 = g2 / jnp.sqrt(v2 + eps)
    w2f = (w2.reshape(c2, 4 * c_) * s2[:, None]).astype(jnp.float32)
    b2f = (be2 - m2 * s2).reshape(c2, 1).astype(jnp.float32)
    w2a, w2b, w2c, w2d = (w2f[:, i * c_:(i + 1) * c_] for i in range(4))

    # Channel-major flattening of NCHW is a free reshape (no transpose).
    xm = x.reshape(N, C1, HW).astype(jnp.float32)
    if HWp != HW:
        xm = jnp.pad(xm, ((0, 0), (0, 0), (0, HWp - HW)))

    mask = _pool_masks(H, W, HW, HWp)                # (8, HWp)

    # Chip-aware VMEM budget: default scoped limits (16 MiB v5e / 32 MiB
    # v6e-v7x) are too small at real YOLO shapes. ~100 MiB on 128-MiB chips,
    # ~48 MiB on v7x (64 MiB physical).
    try:
        cap = int(pltpu.get_tpu_info().vmem_capacity_bytes)
    except Exception:                                # query unavailable
        cap = 64 * 1024 * 1024
    vmem_limit = int(min(max(cap - 16 * 1024 * 1024, 32 * 1024 * 1024),
                         100 * 1024 * 1024))

    kernel = functools.partial(_spp_kernel, W=W, HWp=HWp)

    def _const_spec(shape, single_buffer):
        idx = lambda n, _nd=len(shape): (0,) * _nd
        if single_buffer:
            # Constant index map -> never re-DMA'd; one buffer is enough.
            return pl.BlockSpec(shape, idx, pipeline_mode=pl.Buffered(1))
        return pl.BlockSpec(shape, idx)

    def _run(single_buffer):
        cs = functools.partial(_const_spec, single_buffer=single_buffer)
        return pl.pallas_call(
            kernel,
            out_shape=jax.ShapeDtypeStruct((N, c2, HWp), x.dtype),
            grid_spec=pltpu.PrefetchScalarGridSpec(
                num_scalar_prefetch=0,
                grid=(N,),
                in_specs=[
                    pl.BlockSpec((None, C1, HWp), lambda n: (n, 0, 0)),  # x
                    cs((8, HWp)),                                        # masks
                    cs((c_, C1)),                                        # w1
                    cs((c_, 1)),                                         # b1
                    cs((c2, c_)),                                        # w2a
                    cs((c2, c_)),                                        # w2b
                    cs((c2, c_)),                                        # w2c
                    cs((c2, c_)),                                        # w2d
                    cs((c2, 1)),                                         # b2
                ],
                out_specs=pl.BlockSpec((None, c2, HWp), lambda n: (n, 0, 0)),
            ),
            compiler_params=pltpu.CompilerParams(
                dimension_semantics=("parallel",),
                vmem_limit_bytes=vmem_limit),
        )(xm, mask, w1f, b1f, w2a, w2b, w2c, w2d, b2f)

    try:
        # Single-buffering the constant operands saves ~10 MiB at YOLOv5l scale
        # (most valuable on v7x's 64 MiB VMEM).
        out = _run(single_buffer=True)
    except Exception:
        # TODO(synk): pl.Buffered(1) rejected by this pallas_call lowering;
        #             fall back to default double-buffered constant operands.
        out = _run(single_buffer=False)

    return out[:, :, :HW].reshape(N, c2, H, W)       # NCHW


def _reference(x, w1, g1, be1, m1, v1, w2, g2, be2, m2, v2, eps=1e-5):
    """Plain-JAX reference mirroring PyTorch SPP forward (BN eval mode)."""
    def conv_bn_silu(inp, w, g, b, rm, rv):
        co = w.shape[0]
        y = jnp.einsum('nchw,oc->nohw', inp, w.reshape(co, -1),
                       precision=jax.lax.Precision.HIGHEST)
        s = g / jnp.sqrt(rv + eps)
        bb = b - rm * s
        y = y * s[None, :, None, None] + bb[None, :, None, None]
        return y * jax.nn.sigmoid(y)

    def maxpool(inp, k):
        p = k // 2
        return jax.lax.reduce_window(
            inp, -jnp.inf, jax.lax.max,
            window_dimensions=(1, 1, k, k), window_strides=(1, 1, 1, 1),
            padding=((0, 0), (0, 0), (p, p), (p, p)))

    y = conv_bn_silu(x, w1, g1, be1, m1, v1)
    cat = jnp.concatenate([y, maxpool(y, 5), maxpool(y, 9), maxpool(y, 13)],
                          axis=1)
    return conv_bn_silu(cat, w2, g2, be2, m2, v2)


if __name__ == "__main__":
    # small shapes: batch=2, c1=4 (=> c_=2), spatial=16x16, c2=8
    N, C1, H, W = 2, 4, 16, 16
    C2 = 8
    c_ = C1 // 2

    key = jax.random.PRNGKey(0)
    keys = jax.random.split(key, 11)

    x = jax.random.normal(keys[0], (N, C1, H, W), dtype=jnp.float32)
    # cv1: Conv2d(c1, c_, 1, bias=False) + BN(c_)
    w1 = jax.random.normal(keys[1], (c_, C1, 1, 1), dtype=jnp.float32) * 0.3
    g1 = 1.0 + 0.1 * jax.random.normal(keys[2], (c_,), dtype=jnp.float32)
    be1 = 0.1 * jax.random.normal(keys[3], (c_,), dtype=jnp.float32)
    m1 = 0.1 * jax.random.normal(keys[4], (c_,), dtype=jnp.float32)
    v1 = 1.0 + 0.1 * jax.random.uniform(keys[5], (c_,), dtype=jnp.float32)
    # cv2: Conv2d(4*c_, c2, 1, bias=False) + BN(c2)
    w2 = jax.random.normal(keys[6], (C2, 4 * c_, 1, 1), dtype=jnp.float32) * 0.3
    g2 = 1.0 + 0.1 * jax.random.normal(keys[7], (C2,), dtype=jnp.float32)
    be2 = 0.1 * jax.random.normal(keys[8], (C2,), dtype=jnp.float32)
    m2 = 0.1 * jax.random.normal(keys[9], (C2,), dtype=jnp.float32)
    v2 = 1.0 + 0.1 * jax.random.uniform(keys[10], (C2,), dtype=jnp.float32)

    out = spp_forward(x, w1, g1, be1, m1, v1, w2, g2, be2, m2, v2)
    out = jax.block_until_ready(out)

    ref = _reference(x, w1, g1, be1, m1, v1, w2, g2, be2, m2, v2)
    assert out.shape == (N, C2, H, W), out.shape
    err = float(jnp.max(jnp.abs(out - ref)))
    assert jnp.allclose(out, ref, atol=1e-4, rtol=1e-4), err

    print("KERNEL_OK")
</pallas_src>

<mosaic_0001>
module attributes {stable_mosaic.version = 11 : i64} {
  func.func @_spp_kernel(%arg0: i32, %arg1: memref<1x4x256xf32, #tpu.memory_space<vmem>>, %arg2: memref<8x256xf32, #tpu.memory_space<vmem>>, %arg3: memref<2x4xf32, #tpu.memory_space<vmem>>, %arg4: memref<2x1xf32, #tpu.memory_space<vmem>>, %arg5: memref<8x2xf32, #tpu.memory_space<vmem>>, %arg6: memref<8x2xf32, #tpu.memory_space<vmem>>, %arg7: memref<8x2xf32, #tpu.memory_space<vmem>>, %arg8: memref<8x2xf32, #tpu.memory_space<vmem>>, %arg9: memref<8x1xf32, #tpu.memory_space<vmem>>, %arg10: memref<1x8x256xf32, #tpu.memory_space<vmem>>) attributes {dimension_semantics = [#tpu.dimension_semantics<parallel>], iteration_bounds = array<i64: 2>, scalar_prefetch = 0 : i64, scratch_operands = 0 : i64, tpu.core_type = #tpu.core_type<tc>, window_params = [{transform_indices = @transform_0, window_bounds = array<i64: 1, 4, 256>}, {pipeline_mode = #tpu.pipeline_mode<synchronous>, transform_indices = @transform_1, window_bounds = array<i64: 8, 256>}, {pipeline_mode = #tpu.pipeline_mode<synchronous>, transform_indices = @transform_2, window_bounds = array<i64: 2, 4>}, {pipeline_mode = #tpu.pipeline_mode<synchronous>, transform_indices = @transform_3, window_bounds = array<i64: 2, 1>}, {pipeline_mode = #tpu.pipeline_mode<synchronous>, transform_indices = @transform_4, window_bounds = array<i64: 8, 2>}, {pipeline_mode = #tpu.pipeline_mode<synchronous>, transform_indices = @transform_5, window_bounds = array<i64: 8, 2>}, {pipeline_mode = #tpu.pipeline_mode<synchronous>, transform_indices = @transform_6, window_bounds = array<i64: 8, 2>}, {pipeline_mode = #tpu.pipeline_mode<synchronous>, transform_indices = @transform_7, window_bounds = array<i64: 8, 2>}, {pipeline_mode = #tpu.pipeline_mode<synchronous>, transform_indices = @transform_8, window_bounds = array<i64: 8, 1>}, {transform_indices = @transform_9, window_bounds = array<i64: 1, 8, 256>}]} {
    %c0 = arith.constant 0 : index
    %c0_0 = arith.constant 0 : index
    %c0_1 = arith.constant 0 : index
    %0 = vector.load %arg1[%c0, %c0_0, %c0_1] : memref<1x4x256xf32, #tpu.memory_space<vmem>>, vector<1x4x256xf32>
    %1 = vector.shape_cast %0 : vector<1x4x256xf32> to vector<4x256xf32>
    %c0_2 = arith.constant 0 : index
    %c0_3 = arith.constant 0 : index
    %2 = vector.load %arg3[%c0_2, %c0_3] : memref<2x4xf32, #tpu.memory_space<vmem>>, vector<2x4xf32>
    %cst = arith.constant dense<0.000000e+00> : vector<2x256xf32>
    %3 = tpu.matmul %2, %1, %cst {dimension_numbers = #tpu.dot_dimension_numbers<[1], [0], [0], [1], [0, 0, 1, 1], [], []>} : vector<2x4xf32>, vector<4x256xf32>, vector<2x256xf32> -> vector<2x256xf32>
    %c0_4 = arith.constant 0 : index
    %c0_5 = arith.constant 0 : index
    %4 = vector.load %arg4[%c0_4, %c0_5] : memref<2x1xf32, #tpu.memory_space<vmem>>, vector<2x1xf32>
    %5 = vector.broadcast %4 : vector<2x1xf32> to vector<2x256xf32>
    %6 = arith.addf %3, %5 : vector<2x256xf32>
    %7 = arith.negf %6 : vector<2x256xf32>
    %8 = math.exp %7 : vector<2x256xf32>
    %cst_6 = arith.constant 1.000000e+00 : f32
    %9 = vector.broadcast %cst_6 : f32 to vector<2x256xf32>
    %10 = arith.addf %9, %8 : vector<2x256xf32>
    %11 = arith.divf %9, %10 : vector<2x256xf32>
    %12 = arith.mulf %6, %11 : vector<2x256xf32>
    %c0_7 = arith.constant 0 : index
    %c0_8 = arith.constant 0 : index
    %13 = vector.load %arg2[%c0_7, %c0_8] : memref<8x256xf32, #tpu.memory_space<vmem>>, vector<8x256xf32>
    %14 = vector.extract_strided_slice %13 {offsets = [0, 0], sizes = [1, 256], strides = [1, 1]} : vector<8x256xf32> to vector<1x256xf32>
    %15 = vector.extract_strided_slice %13 {offsets = [1, 0], sizes = [1, 256], strides = [1, 1]} : vector<8x256xf32> to vector<1x256xf32>
    %16 = vector.extract_strided_slice %13 {offsets = [2, 0], sizes = [1, 256], strides = [1, 1]} : vector<8x256xf32> to vector<1x256xf32>
    %17 = vector.extract_strided_slice %13 {offsets = [3, 0], sizes = [1, 256], strides = [1, 1]} : vector<8x256xf32> to vector<1x256xf32>
    %18 = vector.extract_strided_slice %13 {offsets = [4, 0], sizes = [1, 256], strides = [1, 1]} : vector<8x256xf32> to vector<1x256xf32>
    %19 = vector.extract_strided_slice %13 {offsets = [5, 0], sizes = [1, 256], strides = [1, 1]} : vector<8x256xf32> to vector<1x256xf32>
    %20 = vector.extract_strided_slice %13 {offsets = [6, 0], sizes = [1, 256], strides = [1, 1]} : vector<8x256xf32> to vector<1x256xf32>
    %21 = vector.extract_strided_slice %13 {offsets = [7, 0], sizes = [1, 256], strides = [1, 1]} : vector<8x256xf32> to vector<1x256xf32>
    %c0_9 = arith.constant 0 : index
    %c0_10 = arith.constant 0 : index
    %22 = vector.load %arg5[%c0_9, %c0_10] : memref<8x2xf32, #tpu.memory_space<vmem>>, vector<8x2xf32>
    %cst_11 = arith.constant dense<0.000000e+00> : vector<8x256xf32>
    %23 = tpu.matmul %22, %12, %cst_11 {dimension_numbers = #tpu.dot_dimension_numbers<[1], [0], [0], [1], [0, 0, 1, 1], [], []>} : vector<8x2xf32>, vector<2x256xf32>, vector<8x256xf32> -> vector<8x256xf32>
    %c2_i32 = arith.constant 2 : i32
    %24 = tpu.dynamic_rotate %12 by %c2_i32 dim 1 : vector<2x256xf32>, i32 -> vector<2x256xf32>
    %25 = vector.broadcast %14 : vector<1x256xf32> to vector<2x256xf32>
    %26 = arith.addf %24, %25 : vector<2x256xf32>
    %27 = arith.maximumf %12, %26 : vector<2x256xf32>
    %c1_i32 = arith.constant 1 : i32
    %28 = tpu.dynamic_rotate %12 by %c1_i32 dim 1 : vector<2x256xf32>, i32 -> vector<2x256xf32>
    %29 = vector.broadcast %15 : vector<1x256xf32> to vector<2x256xf32>
    %30 = arith.addf %28, %29 : vector<2x256xf32>
    %31 = arith.maximumf %27, %30 : vector<2x256xf32>
    %c255_i32 = arith.constant 255 : i32
    %32 = tpu.dynamic_rotate %12 by %c255_i32 dim 1 : vector<2x256xf32>, i32 -> vector<2x256xf32>
    %33 = vector.broadcast %16 : vector<1x256xf32> to vector<2x256xf32>
    %34 = arith.addf %32, %33 : vector<2x256xf32>
    %35 = arith.maximumf %31, %34 : vector<2x256xf32>
    %c254_i32 = arith.constant 254 : i32
    %36 = tpu.dynamic_rotate %12 by %c254_i32 dim 1 : vector<2x256xf32>, i32 -> vector<2x256xf32>
    %37 = vector.broadcast %17 : vector<1x256xf32> to vector<2x256xf32>
    %38 = arith.addf %36, %37 : vector<2x256xf32>
    %39 = arith.maximumf %35, %38 : vector<2x256xf32>
    %c32_i32 = arith.constant 32 : i32
    %40 = tpu.dynamic_rotate %39 by %c32_i32 dim 1 : vector<2x256xf32>, i32 -> vector<2x256xf32>
    %41 = vector.broadcast %18 : vector<1x256xf32> to vector<2x256xf32>
    %42 = arith.addf %40, %41 : vector<2x256xf32>
    %43 = arith.maximumf %39, %42 : vector<2x256xf32>
    %c16_i32 = arith.constant 16 : i32
    %44 = tpu.dynamic_rotate %39 by %c16_i32 dim 1 : vector<2x256xf32>, i32 -> vector<2x256xf32>
    %45 = vector.broadcast %19 : vector<1x256xf32> to vector<2x256xf32>
    %46 = arith.addf %44, %45 : vector<2x256xf32>
    %47 = arith.maximumf %43, %46 : vector<2x256xf32>
    %c240_i32 = arith.constant 240 : i32
    %48 = tpu.dynamic_rotate %39 by %c240_i32 dim 1 : vector<2x256xf32>, i32 -> vector<2x256xf32>
    %49 = vector.broadcast %20 : vector<1x256xf32> to vector<2x256xf32>
    %50 = arith.addf %48, %49 : vector<2x256xf32>
    %51 = arith.maximumf %47, %50 : vector<2x256xf32>
    %c224_i32 = arith.constant 224 : i32
    %52 = tpu.dynamic_rotate %39 by %c224_i32 dim 1 : vector<2x256xf32>, i32 -> vector<2x256xf32>
    %53 = vector.broadcast %21 : vector<1x256xf32> to vector<2x256xf32>
    %54 = arith.addf %52, %53 : vector<2x256xf32>
    %55 = arith.maximumf %51, %54 : vector<2x256xf32>
    %c0_12 = arith.constant 0 : index
    %c0_13 = arith.constant 0 : index
    %56 = vector.load %arg6[%c0_12, %c0_13] : memref<8x2xf32, #tpu.memory_space<vmem>>, vector<8x2xf32>
    %cst_14 = arith.constant dense<0.000000e+00> : vector<8x256xf32>
    %57 = tpu.matmul %56, %55, %cst_14 {dimension_numbers = #tpu.dot_dimension_numbers<[1], [0], [0], [1], [0, 0, 1, 1], [], []>} : vector<8x2xf32>, vector<2x256xf32>, vector<8x256xf32> -> vector<8x256xf32>
    %58 = arith.addf %23, %57 : vector<8x256xf32>
    %c2_i32_15 = arith.constant 2 : i32
    %59 = tpu.dynamic_rotate %55 by %c2_i32_15 dim 1 : vector<2x256xf32>, i32 -> vector<2x256xf32>
    %60 = vector.broadcast %14 : vector<1x256xf32> to vector<2x256xf32>
    %61 = arith.addf %59, %60 : vector<2x256xf32>
    %62 = arith.maximumf %55, %61 : vector<2x256xf32>
    %c1_i32_16 = arith.constant 1 : i32
    %63 = tpu.dynamic_rotate %55 by %c1_i32_16 dim 1 : vector<2x256xf32>, i32 -> vector<2x256xf32>
    %64 = vector.broadcast %15 : vector<1x256xf32> to vector<2x256xf32>
    %65 = arith.addf %63, %64 : vector<2x256xf32>
    %66 = arith.maximumf %62, %65 : vector<2x256xf32>
    %c255_i32_17 = arith.constant 255 : i32
    %67 = tpu.dynamic_rotate %55 by %c255_i32_17 dim 1 : vector<2x256xf32>, i32 -> vector<2x256xf32>
    %68 = vector.broadcast %16 : vector<1x256xf32> to vector<2x256xf32>
    %69 = arith.addf %67, %68 : vector<2x256xf32>
    %70 = arith.maximumf %66, %69 : vector<2x256xf32>
    %c254_i32_18 = arith.constant 254 : i32
    %71 = tpu.dynamic_rotate %55 by %c254_i32_18 dim 1 : vector<2x256xf32>, i32 -> vector<2x256xf32>
    %72 = vector.broadcast %17 : vector<1x256xf32> to vector<2x256xf32>
    %73 = arith.addf %71, %72 : vector<2x256xf32>
    %74 = arith.maximumf %70, %73 : vector<2x256xf32>
    %c32_i32_19 = arith.constant 32 : i32
    %75 = tpu.dynamic_rotate %74 by %c32_i32_19 dim 1 : vector<2x256xf32>, i32 -> vector<2x256xf32>
    %76 = vector.broadcast %18 : vector<1x256xf32> to vector<2x256xf32>
    %77 = arith.addf %75, %76 : vector<2x256xf32>
    %78 = arith.maximumf %74, %77 : vector<2x256xf32>
    %c16_i32_20 = arith.constant 16 : i32
    %79 = tpu.dynamic_rotate %74 by %c16_i32_20 dim 1 : vector<2x256xf32>, i32 -> vector<2x256xf32>
    %80 = vector.broadcast %19 : vector<1x256xf32> to vector<2x256xf32>
    %81 = arith.addf %79, %80 : vector<2x256xf32>
    %82 = arith.maximumf %78, %81 : vector<2x256xf32>
    %c240_i32_21 = arith.constant 240 : i32
    %83 = tpu.dynamic_rotate %74 by %c240_i32_21 dim 1 : vector<2x256xf32>, i32 -> vector<2x256xf32>
    %84 = vector.broadcast %20 : vector<1x256xf32> to vector<2x256xf32>
    %85 = arith.addf %83, %84 : vector<2x256xf32>
    %86 = arith.maximumf %82, %85 : vector<2x256xf32>
    %c224_i32_22 = arith.constant 224 : i32
    %87 = tpu.dynamic_rotate %74 by %c224_i32_22 dim 1 : vector<2x256xf32>, i32 -> vector<2x256xf32>
    %88 = vector.broadcast %21 : vector<1x256xf32> to vector<2x256xf32>
    %89 = arith.addf %87, %88 : vector<2x256xf32>
    %90 = arith.maximumf %86, %89 : vector<2x256xf32>
    %c0_23 = arith.constant 0 : index
    %c0_24 = arith.constant 0 : index
    %91 = vector.load %arg7[%c0_23, %c0_24] : memref<8x2xf32, #tpu.memory_space<vmem>>, vector<8x2xf32>
    %cst_25 = arith.constant dense<0.000000e+00> : vector<8x256xf32>
    %92 = tpu.matmul %91, %90, %cst_25 {dimension_numbers = #tpu.dot_dimension_numbers<[1], [0], [0], [1], [0, 0, 1, 1], [], []>} : vector<8x2xf32>, vector<2x256xf32>, vector<8x256xf32> -> vector<8x256xf32>
    %93 = arith.addf %58, %92 : vector<8x256xf32>
    %c2_i32_26 = arith.constant 2 : i32
    %94 = tpu.dynamic_rotate %90 by %c2_i32_26 dim 1 : vector<2x256xf32>, i32 -> vector<2x256xf32>
    %95 = vector.broadcast %14 : vector<1x256xf32> to vector<2x256xf32>
    %96 = arith.addf %94, %95 : vector<2x256xf32>
    %97 = arith.maximumf %90, %96 : vector<2x256xf32>
    %c1_i32_27 = arith.constant 1 : i32
    %98 = tpu.dynamic_rotate %90 by %c1_i32_27 dim 1 : vector<2x256xf32>, i32 -> vector<2x256xf32>
    %99 = vector.broadcast %15 : vector<1x256xf32> to vector<2x256xf32>
    %100 = arith.addf %98, %99 : vector<2x256xf32>
    %101 = arith.maximumf %97, %100 : vector<2x256xf32>
    %c255_i32_28 = arith.constant 255 : i32
    %102 = tpu.dynamic_rotate %90 by %c255_i32_28 dim 1 : vector<2x256xf32>, i32 -> vector<2x256xf32>
    %103 = vector.broadcast %16 : vector<1x256xf32> to vector<2x256xf32>
    %104 = arith.addf %102, %103 : vector<2x256xf32>
    %105 = arith.maximumf %101, %104 : vector<2x256xf32>
    %c254_i32_29 = arith.constant 254 : i32
    %106 = tpu.dynamic_rotate %90 by %c254_i32_29 dim 1 : vector<2x256xf32>, i32 -> vector<2x256xf32>
    %107 = vector.broadcast %17 : vector<1x256xf32> to vector<2x256xf32>
    %108 = arith.addf %106, %107 : vector<2x256xf32>
    %109 = arith.maximumf %105, %108 : vector<2x256xf32>
    %c32_i32_30 = arith.constant 32 : i32
    %110 = tpu.dynamic_rotate %109 by %c32_i32_30 dim 1 : vector<2x256xf32>, i32 -> vector<2x256xf32>
    %111 = vector.broadcast %18 : vector<1x256xf32> to vector<2x256xf32>
    %112 = arith.addf %110, %111 : vector<2x256xf32>
    %113 = arith.maximumf %109, %112 : vector<2x256xf32>
    %c16_i32_31 = arith.constant 16 : i32
    %114 = tpu.dynamic_rotate %109 by %c16_i32_31 dim 1 : vector<2x256xf32>, i32 -> vector<2x256xf32>
    %115 = vector.broadcast %19 : vector<1x256xf32> to vector<2x256xf32>
    %116 = arith.addf %114, %115 : vector<2x256xf32>
    %117 = arith.maximumf %113, %116 : vector<2x256xf32>
    %c240_i32_32 = arith.constant 240 : i32
    %118 = tpu.dynamic_rotate %109 by %c240_i32_32 dim 1 : vector<2x256xf32>, i32 -> vector<2x256xf32>
    %119 = vector.broadcast %20 : vector<1x256xf32> to vector<2x256xf32>
    %120 = arith.addf %118, %119 : vector<2x256xf32>
    %121 = arith.maximumf %117, %120 : vector<2x256xf32>
    %c224_i32_33 = arith.constant 224 : i32
    %122 = tpu.dynamic_rotate %109 by %c224_i32_33 dim 1 : vector<2x256xf32>, i32 -> vector<2x256xf32>
    %123 = vector.broadcast %21 : vector<1x256xf32> to vector<2x256xf32>
    %124 = arith.addf %122, %123 : vector<2x256xf32>
    %125 = arith.maximumf %121, %124 : vector<2x256xf32>
    %c0_34 = arith.constant 0 : index
    %c0_35 = arith.constant 0 : index
    %126 = vector.load %arg8[%c0_34, %c0_35] : memref<8x2xf32, #tpu.memory_space<vmem>>, vector<8x2xf32>
    %cst_36 = arith.constant dense<0.000000e+00> : vector<8x256xf32>
    %127 = tpu.matmul %126, %125, %cst_36 {dimension_numbers = #tpu.dot_dimension_numbers<[1], [0], [0], [1], [0, 0, 1, 1], [], []>} : vector<8x2xf32>, vector<2x256xf32>, vector<8x256xf32> -> vector<8x256xf32>
    %128 = arith.addf %93, %127 : vector<8x256xf32>
    %c0_37 = arith.constant 0 : index
    %c0_38 = arith.constant 0 : index
    %129 = vector.load %arg9[%c0_37, %c0_38] : memref<8x1xf32, #tpu.memory_space<vmem>>, vector<8x1xf32>
    %130 = vector.broadcast %129 : vector<8x1xf32> to vector<8x256xf32>
    %131 = arith.addf %128, %130 : vector<8x256xf32>
    %132 = arith.negf %131 : vector<8x256xf32>
    %133 = math.exp %132 : vector<8x256xf32>
    %cst_39 = arith.constant 1.000000e+00 : f32
    %134 = vector.broadcast %cst_39 : f32 to vector<8x256xf32>
    %135 = arith.addf %134, %133 : vector<8x256xf32>
    %136 = arith.divf %134, %135 : vector<8x256xf32>
    %137 = arith.mulf %131, %136 : vector<8x256xf32>
    %c0_40 = arith.constant 0 : index
    %c0_41 = arith.constant 0 : index
    %c0_42 = arith.constant 0 : index
    %138 = vector.load %arg10[%c0_40, %c0_41, %c0_42] : memref<1x8x256xf32, #tpu.memory_space<vmem>>, vector<1x8x256xf32>
    %139 = vector.shape_cast %138 : vector<1x8x256xf32> to vector<8x256xf32>
    %140 = vector.shape_cast %137 : vector<8x256xf32> to vector<1x8x256xf32>
    tpu.vector_store %arg10[%c0_40, %c0_41, %c0_42], %140 {strides = array<i32>} : memref<1x8x256xf32, #tpu.memory_space<vmem>>, vector<1x8x256xf32>,
    return
  }
  func.func @transform_0(%arg0: i32) -> (i32, i32, i32) {
    %c0_i32 = arith.constant 0 : i32
    %c0_i32_0 = arith.constant 0 : i32
    %c0_i32_1 = arith.constant 0 : i32
    return %arg0, %c0_i32, %c0_i32_0 : i32, i32, i32
  }
  func.func @transform_1(%arg0: i32) -> (i32, i32) {
    %c0_i32 = arith.constant 0 : i32
    %c0_i32_0 = arith.constant 0 : i32
    %c0_i32_1 = arith.constant 0 : i32
    return %c0_i32, %c0_i32_0 : i32, i32
  }
  func.func @transform_2(%arg0: i32) -> (i32, i32) {
    %c0_i32 = arith.constant 0 : i32
    %c0_i32_0 = arith.constant 0 : i32
    %c0_i32_1 = arith.constant 0 : i32
    return %c0_i32, %c0_i32_0 : i32, i32
  }
  func.func @transform_3(%arg0: i32) -> (i32, i32) {
    %c0_i32 = arith.constant 0 : i32
    %c0_i32_0 = arith.constant 0 : i32
    %c0_i32_1 = arith.constant 0 : i32
    return %c0_i32, %c0_i32_0 : i32, i32
  }
  func.func @transform_4(%arg0: i32) -> (i32, i32) {
    %c0_i32 = arith.constant 0 : i32
    %c0_i32_0 = arith.constant 0 : i32
    %c0_i32_1 = arith.constant 0 : i32
    return %c0_i32, %c0_i32_0 : i32, i32
  }
  func.func @transform_5(%arg0: i32) -> (i32, i32) {
    %c0_i32 = arith.constant 0 : i32
    %c0_i32_0 = arith.constant 0 : i32
    %c0_i32_1 = arith.constant 0 : i32
    return %c0_i32, %c0_i32_0 : i32, i32
  }
  func.func @transform_6(%arg0: i32) -> (i32, i32) {
    %c0_i32 = arith.constant 0 : i32
    %c0_i32_0 = arith.constant 0 : i32
    %c0_i32_1 = arith.constant 0 : i32
    return %c0_i32, %c0_i32_0 : i32, i32
  }
  func.func @transform_7(%arg0: i32) -> (i32, i32) {
    %c0_i32 = arith.constant 0 : i32
    %c0_i32_0 = arith.constant 0 : i32
    %c0_i32_1 = arith.constant 0 : i32
    return %c0_i32, %c0_i32_0 : i32, i32
  }
  func.func @transform_8(%arg0: i32) -> (i32, i32) {
    %c0_i32 = arith.constant 0 : i32
    %c0_i32_0 = arith.constant 0 : i32
    %c0_i32_1 = arith.constant 0 : i32
    return %c0_i32, %c0_i32_0 : i32, i32
  }
  func.func @transform_9(%arg0: i32) -> (i32, i32, i32) {
    %c0_i32 = arith.constant 0 : i32
    %c0_i32_0 = arith.constant 0 : i32
    %c0_i32_1 = arith.constant 0 : i32
    return %arg0, %c0_i32, %c0_i32_0 : i32, i32, i32
  }
}

module attributes {stable_mosaic.version = 11 : i64} {
  func.func @_spp_kernel(%arg0: i32, %arg1: memref<1x4x256xf32, #tpu.memory_space<vmem>>, %arg2: memref<8x256xf32, #tpu.memory_space<vmem>>, %arg3: memref<2x4xf32, #tpu.memory_space<vmem>>, %arg4: memref<2x1xf32, #tpu.memory_space<vmem>>, %arg5: memref<8x2xf32, #tpu.memory_space<vmem>>, %arg6: memref<8x2xf32, #tpu.memory_space<vmem>>, %arg7: memref<8x2xf32, #tpu.memory_space<vmem>>, %arg8: memref<8x2xf32, #tpu.memory_space<vmem>>, %arg9: memref<8x1xf32, #tpu.memory_space<vmem>>, %arg10: memref<1x8x256xf32, #tpu.memory_space<vmem>>) attributes {dimension_semantics = [#tpu.dimension_semantics<parallel>], iteration_bounds = array<i64: 2>, scalar_prefetch = 0 : i64, scratch_operands = 0 : i64, tpu.core_type = #tpu.core_type<tc>, window_params = [{transform_indices = @transform_0, window_bounds = array<i64: 1, 4, 256>}, {pipeline_mode = #tpu.pipeline_mode<synchronous>, transform_indices = @transform_1, window_bounds = array<i64: 8, 256>}, {pipeline_mode = #tpu.pipeline_mode<synchronous>, transform_indices = @transform_2, window_bounds = array<i64: 2, 4>}, {pipeline_mode = #tpu.pipeline_mode<synchronous>, transform_indices = @transform_3, window_bounds = array<i64: 2, 1>}, {pipeline_mode = #tpu.pipeline_mode<synchronous>, transform_indices = @transform_4, window_bounds = array<i64: 8, 2>}, {pipeline_mode = #tpu.pipeline_mode<synchronous>, transform_indices = @transform_5, window_bounds = array<i64: 8, 2>}, {pipeline_mode = #tpu.pipeline_mode<synchronous>, transform_indices = @transform_6, window_bounds = array<i64: 8, 2>}, {pipeline_mode = #tpu.pipeline_mode<synchronous>, transform_indices = @transform_7, window_bounds = array<i64: 8, 2>}, {pipeline_mode = #tpu.pipeline_mode<synchronous>, transform_indices = @transform_8, window_bounds = array<i64: 8, 1>}, {transform_indices = @transform_9, window_bounds = array<i64: 1, 8, 256>}]} {
    %c0 = arith.constant 0 : index
    %c0_0 = arith.constant 0 : index
    %c0_1 = arith.constant 0 : index
    %0 = vector.load %arg1[%c0, %c0_0, %c0_1] : memref<1x4x256xf32, #tpu.memory_space<vmem>>, vector<1x4x256xf32>
    %1 = vector.shape_cast %0 : vector<1x4x256xf32> to vector<4x256xf32>
    %c0_2 = arith.constant 0 : index
    %c0_3 = arith.constant 0 : index
    %2 = vector.load %arg3[%c0_2, %c0_3] : memref<2x4xf32, #tpu.memory_space<vmem>>, vector<2x4xf32>
    %cst = arith.constant dense<0.000000e+00> : vector<2x256xf32>
    %3 = tpu.matmul %2, %1, %cst {dimension_numbers = #tpu.dot_dimension_numbers<[1], [0], [0], [1], [0, 0, 1, 1], [], []>} : vector<2x4xf32>, vector<4x256xf32>, vector<2x256xf32> -> vector<2x256xf32>
    %c0_4 = arith.constant 0 : index
    %c0_5 = arith.constant 0 : index
    %4 = vector.load %arg4[%c0_4, %c0_5] : memref<2x1xf32, #tpu.memory_space<vmem>>, vector<2x1xf32>
    %5 = vector.broadcast %4 : vector<2x1xf32> to vector<2x256xf32>
    %6 = arith.addf %3, %5 : vector<2x256xf32>
    %7 = arith.negf %6 : vector<2x256xf32>
    %8 = math.exp %7 : vector<2x256xf32>
    %cst_6 = arith.constant 1.000000e+00 : f32
    %9 = vector.broadcast %cst_6 : f32 to vector<2x256xf32>
    %10 = arith.addf %9, %8 : vector<2x256xf32>
    %11 = arith.divf %9, %10 : vector<2x256xf32>
    %12 = arith.mulf %6, %11 : vector<2x256xf32>
    %c0_7 = arith.constant 0 : index
    %c0_8 = arith.constant 0 : index
    %13 = vector.load %arg2[%c0_7, %c0_8] : memref<8x256xf32, #tpu.memory_space<vmem>>, vector<8x256xf32>
    %14 = vector.extract_strided_slice %13 {offsets = [0, 0], sizes = [1, 256], strides = [1, 1]} : vector<8x256xf32> to vector<1x256xf32>
    %15 = vector.extract_strided_slice %13 {offsets = [1, 0], sizes = [1, 256], strides = [1, 1]} : vector<8x256xf32> to vector<1x256xf32>
    %16 = vector.extract_strided_slice %13 {offsets = [2, 0], sizes = [1, 256], strides = [1, 1]} : vector<8x256xf32> to vector<1x256xf32>
    %17 = vector.extract_strided_slice %13 {offsets = [3, 0], sizes = [1, 256], strides = [1, 1]} : vector<8x256xf32> to vector<1x256xf32>
    %18 = vector.extract_strided_slice %13 {offsets = [4, 0], sizes = [1, 256], strides = [1, 1]} : vector<8x256xf32> to vector<1x256xf32>
    %19 = vector.extract_strided_slice %13 {offsets = [5, 0], sizes = [1, 256], strides = [1, 1]} : vector<8x256xf32> to vector<1x256xf32>
    %20 = vector.extract_strided_slice %13 {offsets = [6, 0], sizes = [1, 256], strides = [1, 1]} : vector<8x256xf32> to vector<1x256xf32>
    %21 = vector.extract_strided_slice %13 {offsets = [7, 0], sizes = [1, 256], strides = [1, 1]} : vector<8x256xf32> to vector<1x256xf32>
    %c0_9 = arith.constant 0 : index
    %c0_10 = arith.constant 0 : index
    %22 = vector.load %arg5[%c0_9, %c0_10] : memref<8x2xf32, #tpu.memory_space<vmem>>, vector<8x2xf32>
    %cst_11 = arith.constant dense<0.000000e+00> : vector<8x256xf32>
    %23 = tpu.matmul %22, %12, %cst_11 {dimension_numbers = #tpu.dot_dimension_numbers<[1], [0], [0], [1], [0, 0, 1, 1], [], []>} : vector<8x2xf32>, vector<2x256xf32>, vector<8x256xf32> -> vector<8x256xf32>
    %c2_i32 = arith.constant 2 : i32
    %24 = tpu.dynamic_rotate %12 by %c2_i32 dim 1 : vector<2x256xf32>, i32 -> vector<2x256xf32>
    %25 = vector.broadcast %14 : vector<1x256xf32> to vector<2x256xf32>
    %26 = arith.addf %24, %25 : vector<2x256xf32>
    %27 = arith.maximumf %12, %26 : vector<2x256xf32>
    %c1_i32 = arith.constant 1 : i32
    %28 = tpu.dynamic_rotate %12 by %c1_i32 dim 1 : vector<2x256xf32>, i32 -> vector<2x256xf32>
    %29 = vector.broadcast %15 : vector<1x256xf32> to vector<2x256xf32>
    %30 = arith.addf %28, %29 : vector<2x256xf32>
    %31 = arith.maximumf %27, %30 : vector<2x256xf32>
    %c255_i32 = arith.constant 255 : i32
    %32 = tpu.dynamic_rotate %12 by %c255_i32 dim 1 : vector<2x256xf32>, i32 -> vector<2x256xf32>
    %33 = vector.broadcast %16 : vector<1x256xf32> to vector<2x256xf32>
    %34 = arith.addf %32, %33 : vector<2x256xf32>
    %35 = arith.maximumf %31, %34 : vector<2x256xf32>
    %c254_i32 = arith.constant 254 : i32
    %36 = tpu.dynamic_rotate %12 by %c254_i32 dim 1 : vector<2x256xf32>, i32 -> vector<2x256xf32>
    %37 = vector.broadcast %17 : vector<1x256xf32> to vector<2x256xf32>
    %38 = arith.addf %36, %37 : vector<2x256xf32>
    %39 = arith.maximumf %35, %38 : vector<2x256xf32>
    %c32_i32 = arith.constant 32 : i32
    %40 = tpu.dynamic_rotate %39 by %c32_i32 dim 1 : vector<2x256xf32>, i32 -> vector<2x256xf32>
    %41 = vector.broadcast %18 : vector<1x256xf32> to vector<2x256xf32>
    %42 = arith.addf %40, %41 : vector<2x256xf32>
    %43 = arith.maximumf %39, %42 : vector<2x256xf32>
    %c16_i32 = arith.constant 16 : i32
    %44 = tpu.dynamic_rotate %39 by %c16_i32 dim 1 : vector<2x256xf32>, i32 -> vector<2x256xf32>
    %45 = vector.broadcast %19 : vector<1x256xf32> to vector<2x256xf32>
    %46 = arith.addf %44, %45 : vector<2x256xf32>
    %47 = arith.maximumf %43, %46 : vector<2x256xf32>
    %c240_i32 = arith.constant 240 : i32
    %48 = tpu.dynamic_rotate %39 by %c240_i32 dim 1 : vector<2x256xf32>, i32 -> vector<2x256xf32>
    %49 = vector.broadcast %20 : vector<1x256xf32> to vector<2x256xf32>
    %50 = arith.addf %48, %49 : vector<2x256xf32>
    %51 = arith.maximumf %47, %50 : vector<2x256xf32>
    %c224_i32 = arith.constant 224 : i32
    %52 = tpu.dynamic_rotate %39 by %c224_i32 dim 1 : vector<2x256xf32>, i32 -> vector<2x256xf32>
    %53 = vector.broadcast %21 : vector<1x256xf32> to vector<2x256xf32>
    %54 = arith.addf %52, %53 : vector<2x256xf32>
    %55 = arith.maximumf %51, %54 : vector<2x256xf32>
    %c0_12 = arith.constant 0 : index
    %c0_13 = arith.constant 0 : index
    %56 = vector.load %arg6[%c0_12, %c0_13] : memref<8x2xf32, #tpu.memory_space<vmem>>, vector<8x2xf32>
    %cst_14 = arith.constant dense<0.000000e+00> : vector<8x256xf32>
    %57 = tpu.matmul %56, %55, %cst_14 {dimension_numbers = #tpu.dot_dimension_numbers<[1], [0], [0], [1], [0, 0, 1, 1], [], []>} : vector<8x2xf32>, vector<2x256xf32>, vector<8x256xf32> -> vector<8x256xf32>
    %58 = arith.addf %23, %57 : vector<8x256xf32>
    %c2_i32_15 = arith.constant 2 : i32
    %59 = tpu.dynamic_rotate %55 by %c2_i32_15 dim 1 : vector<2x256xf32>, i32 -> vector<2x256xf32>
    %60 = vector.broadcast %14 : vector<1x256xf32> to vector<2x256xf32>
    %61 = arith.addf %59, %60 : vector<2x256xf32>
    %62 = arith.maximumf %55, %61 : vector<2x256xf32>
    %c1_i32_16 = arith.constant 1 : i32
    %63 = tpu.dynamic_rotate %55 by %c1_i32_16 dim 1 : vector<2x256xf32>, i32 -> vector<2x256xf32>
    %64 = vector.broadcast %15 : vector<1x256xf32> to vector<2x256xf32>
    %65 = arith.addf %63, %64 : vector<2x256xf32>
    %66 = arith.maximumf %62, %65 : vector<2x256xf32>
    %c255_i32_17 = arith.constant 255 : i32
    %67 = tpu.dynamic_rotate %55 by %c255_i32_17 dim 1 : vector<2x256xf32>, i32 -> vector<2x256xf32>
    %68 = vector.broadcast %16 : vector<1x256xf32> to vector<2x256xf32>
    %69 = arith.addf %67, %68 : vector<2x256xf32>
    %70 = arith.maximumf %66, %69 : vector<2x256xf32>
    %c254_i32_18 = arith.constant 254 : i32
    %71 = tpu.dynamic_rotate %55 by %c254_i32_18 dim 1 : vector<2x256xf32>, i32 -> vector<2x256xf32>
    %72 = vector.broadcast %17 : vector<1x256xf32> to vector<2x256xf32>
    %73 = arith.addf %71, %72 : vector<2x256xf32>
    %74 = arith.maximumf %70, %73 : vector<2x256xf32>
    %c32_i32_19 = arith.constant 32 : i32
    %75 = tpu.dynamic_rotate %74 by %c32_i32_19 dim 1 : vector<2x256xf32>, i32 -> vector<2x256xf32>
    %76 = vector.broadcast %18 : vector<1x256xf32> to vector<2x256xf32>
    %77 = arith.addf %75, %76 : vector<2x256xf32>
    %78 = arith.maximumf %74, %77 : vector<2x256xf32>
    %c16_i32_20 = arith.constant 16 : i32
    %79 = tpu.dynamic_rotate %74 by %c16_i32_20 dim 1 : vector<2x256xf32>, i32 -> vector<2x256xf32>
    %80 = vector.broadcast %19 : vector<1x256xf32> to vector<2x256xf32>
    %81 = arith.addf %79, %80 : vector<2x256xf32>
    %82 = arith.maximumf %78, %81 : vector<2x256xf32>
    %c240_i32_21 = arith.constant 240 : i32
    %83 = tpu.dynamic_rotate %74 by %c240_i32_21 dim 1 : vector<2x256xf32>, i32 -> vector<2x256xf32>
    %84 = vector.broadcast %20 : vector<1x256xf32> to vector<2x256xf32>
    %85 = arith.addf %83, %84 : vector<2x256xf32>
    %86 = arith.maximumf %82, %85 : vector<2x256xf32>
    %c224_i32_22 = arith.constant 224 : i32
    %87 = tpu.dynamic_rotate %74 by %c224_i32_22 dim 1 : vector<2x256xf32>, i32 -> vector<2x256xf32>
    %88 = vector.broadcast %21 : vector<1x256xf32> to vector<2x256xf32>
    %89 = arith.addf %87, %88 : vector<2x256xf32>
    %90 = arith.maximumf %86, %89 : vector<2x256xf32>
    %c0_23 = arith.constant 0 : index
    %c0_24 = arith.constant 0 : index
    %91 = vector.load %arg7[%c0_23, %c0_24] : memref<8x2xf32, #tpu.memory_space<vmem>>, vector<8x2xf32>
    %cst_25 = arith.constant dense<0.000000e+00> : vector<8x256xf32>
    %92 = tpu.matmul %91, %90, %cst_25 {dimension_numbers = #tpu.dot_dimension_numbers<[1], [0], [0], [1], [0, 0, 1, 1], [], []>} : vector<8x2xf32>, vector<2x256xf32>, vector<8x256xf32> -> vector<8x256xf32>
    %93 = arith.addf %58, %92 : vector<8x256xf32>
    %c2_i32_26 = arith.constant 2 : i32
    %94 = tpu.dynamic_rotate %90 by %c2_i32_26 dim 1 : vector<2x256xf32>, i32 -> vector<2x256xf32>
    %95 = vector.broadcast %14 : vector<1x256xf32> to vector<2x256xf32>
    %96 = arith.addf %94, %95 : vector<2x256xf32>
    %97 = arith.maximumf %90, %96 : vector<2x256xf32>
    %c1_i32_27 = arith.constant 1 : i32
    %98 = tpu.dynamic_rotate %90 by %c1_i32_27 dim 1 : vector<2x256xf32>, i32 -> vector<2x256xf32>
    %99 = vector.broadcast %15 : vector<1x256xf32> to vector<2x256xf32>
    %100 = arith.addf %98, %99 : vector<2x256xf32>
    %101 = arith.maximumf %97, %100 : vector<2x256xf32>
    %c255_i32_28 = arith.constant 255 : i32
    %102 = tpu.dynamic_rotate %90 by %c255_i32_28 dim 1 : vector<2x256xf32>, i32 -> vector<2x256xf32>
    %103 = vector.broadcast %16 : vector<1x256xf32> to vector<2x256xf32>
    %104 = arith.addf %102, %103 : vector<2x256xf32>
    %105 = arith.maximumf %101, %104 : vector<2x256xf32>
    %c254_i32_29 = arith.constant 254 : i32
    %106 = tpu.dynamic_rotate %90 by %c254_i32_29 dim 1 : vector<2x256xf32>, i32 -> vector<2x256xf32>
    %107 = vector.broadcast %17 : vector<1x256xf32> to vector<2x256xf32>
    %108 = arith.addf %106, %107 : vector<2x256xf32>
    %109 = arith.maximumf %105, %108 : vector<2x256xf32>
    %c32_i32_30 = arith.constant 32 : i32
    %110 = tpu.dynamic_rotate %109 by %c32_i32_30 dim 1 : vector<2x256xf32>, i32 -> vector<2x256xf32>
    %111 = vector.broadcast %18 : vector<1x256xf32> to vector<2x256xf32>
    %112 = arith.addf %110, %111 : vector<2x256xf32>
    %113 = arith.maximumf %109, %112 : vector<2x256xf32>
    %c16_i32_31 = arith.constant 16 : i32
    %114 = tpu.dynamic_rotate %109 by %c16_i32_31 dim 1 : vector<2x256xf32>, i32 -> vector<2x256xf32>
    %115 = vector.broadcast %19 : vector<1x256xf32> to vector<2x256xf32>
    %116 = arith.addf %114, %115 : vector<2x256xf32>
    %117 = arith.maximumf %113, %116 : vector<2x256xf32>
    %c240_i32_32 = arith.constant 240 : i32
    %118 = tpu.dynamic_rotate %109 by %c240_i32_32 dim 1 : vector<2x256xf32>, i32 -> vector<2x256xf32>
    %119 = vector.broadcast %20 : vector<1x256xf32> to vector<2x256xf32>
    %120 = arith.addf %118, %119 : vector<2x256xf32>
    %121 = arith.maximumf %117, %120 : vector<2x256xf32>
    %c224_i32_33 = arith.constant 224 : i32
    %122 = tpu.dynamic_rotate %109 by %c224_i32_33 dim 1 : vector<2x256xf32>, i32 -> vector<2x256xf32>
    %123 = vector.broadcast %21 : vector<1x256xf32> to vector<2x256xf32>
    %124 = arith.addf %122, %123 : vector<2x256xf32>
    %125 = arith.maximumf %121, %124 : vector<2x256xf32>
    %c0_34 = arith.constant 0 : index
    %c0_35 = arith.constant 0 : index
    %126 = vector.load %arg8[%c0_34, %c0_35] : memref<8x2xf32, #tpu.memory_space<vmem>>, vector<8x2xf32>
    %cst_36 = arith.constant dense<0.000000e+00> : vector<8x256xf32>
    %127 = tpu.matmul %126, %125, %cst_36 {dimension_numbers = #tpu.dot_dimension_numbers<[1], [0], [0], [1], [0, 0, 1, 1], [], []>} : vector<8x2xf32>, vector<2x256xf32>, vector<8x256xf32> -> vector<8x256xf32>
    %128 = arith.addf %93, %127 : vector<8x256xf32>
    %c0_37 = arith.constant 0 : index
    %c0_38 = arith.constant 0 : index
    %129 = vector.load %arg9[%c0_37, %c0_38] : memref<8x1xf32, #tpu.memory_space<vmem>>, vector<8x1xf32>
    %130 = vector.broadcast %129 : vector<8x1xf32> to vector<8x256xf32>
    %131 = arith.addf %128, %130 : vector<8x256xf32>
    %132 = arith.negf %131 : vector<8x256xf32>
    %133 = math.exp %132 : vector<8x256xf32>
    %cst_39 = arith.constant 1.000000e+00 : f32
    %134 = vector.broadcast %cst_39 : f32 to vector<8x256xf32>
    %135 = arith.addf %134, %133 : vector<8x256xf32>
    %136 = arith.divf %134, %135 : vector<8x256xf32>
    %137 = arith.mulf %131, %136 : vector<8x256xf32>
    %c0_40 = arith.constant 0 : index
    %c0_41 = arith.constant 0 : index
    %c0_42 = arith.constant 0 : index
    %138 = vector.load %arg10[%c0_40, %c0_41, %c0_42] : memref<1x8x256xf32, #tpu.memory_space<vmem>>, vector<1x8x256xf32>
    %139 = vector.shape_cast %138 : vector<1x8x256xf32> to vector<8x256xf32>
    %140 = vector.shape_cast %137 : vector<8x256xf32> to vector<1x8x256xf32>
    tpu.vector_store %arg10[%c0_40, %c0_41, %c0_42], %140 {strides = array<i32>} : memref<1x8x256xf32, #tpu.memory_space<vmem>>, vector<1x8x256xf32>,
    return
  }
  func.func @transform_0(%arg0: i32) -> (i32, i32, i32) {
    %c0_i32 = arith.constant 0 : i32
    %c0_i32_0 = arith.constant 0 : i32
    %c0_i32_1 = arith.constant 0 : i32
    return %arg0, %c0_i32, %c0_i32_0 : i32, i32, i32
  }
  func.func @transform_1(%arg0: i32) -> (i32, i32) {
    %c0_i32 = arith.constant 0 : i32
    %c0_i32_0 = arith.constant 0 : i32
    %c0_i32_1 = arith.constant 0 : i32
    return %c0_i32, %c0_i32_0 : i32, i32
  }
  func.func @transform_2(%arg0: i32) -> (i32, i32) {
    %c0_i32 = arith.constant 0 : i32
    %c0_i32_0 = arith.constant 0 : i32
    %c0_i32_1 = arith.constant 0 : i32
    return %c0_i32, %c0_i32_0 : i32, i32
  }
  func.func @transform_3(%arg0: i32) -> (i32, i32) {
    %c0_i32 = arith.constant 0 : i32
    %c0_i32_0 = arith.constant 0 : i32
    %c0_i32_1 = arith.constant 0 : i32
    return %c0_i32, %c0_i32_0 : i32, i32
  }
  func.func @transform_4(%arg0: i32) -> (i32, i32) {
    %c0_i32 = arith.constant 0 : i32
    %c0_i32_0 = arith.constant 0 : i32
    %c0_i32_1 = arith.constant 0 : i32
    return %c0_i32, %c0_i32_0 : i32, i32
  }
  func.func @transform_5(%arg0: i32) -> (i32, i32) {
    %c0_i32 = arith.constant 0 : i32
    %c0_i32_0 = arith.constant 0 : i32
    %c0_i32_1 = arith.constant 0 : i32
    return %c0_i32, %c0_i32_0 : i32, i32
  }
  func.func @transform_6(%arg0: i32) -> (i32, i32) {
    %c0_i32 = arith.constant 0 : i32
    %c0_i32_0 = arith.constant 0 : i32
    %c0_i32_1 = arith.constant 0 : i32
    return %c0_i32, %c0_i32_0 : i32, i32
  }
  func.func @transform_7(%arg0: i32) -> (i32, i32) {
    %c0_i32 = arith.constant 0 : i32
    %c0_i32_0 = arith.constant 0 : i32
    %c0_i32_1 = arith.constant 0 : i32
    return %c0_i32, %c0_i32_0 : i32, i32
  }
  func.func @transform_8(%arg0: i32) -> (i32, i32) {
    %c0_i32 = arith.constant 0 : i32
    %c0_i32_0 = arith.constant 0 : i32
    %c0_i32_1 = arith.constant 0 : i32
    return %c0_i32, %c0_i32_0 : i32, i32
  }
  func.func @transform_9(%arg0: i32) -> (i32, i32, i32) {
    %c0_i32 = arith.constant 0 : i32
    %c0_i32_0 = arith.constant 0 : i32
    %c0_i32_1 = arith.constant 0 : i32
    return %arg0, %c0_i32, %c0_i32_0 : i32, i32, i32
  }
}

</mosaic_0001>

<llo_original>
// kernel: tpu_custom_call.1
$region0: #{tpu_custom_call.1}
  #allocation0 [shape = 'u32[]', space=smem, size = 0x4, offset = 0x4, fixed_abs, tag = 'smem constant byte address 0x4 - core index']
  #allocation1 [shape = 'u32[144,128]{1,0:T(1,128)}', space=vmem, size = 0x12000, scoped, tag = 'internal scratch']
  %s0 = inlined_call_operand.vmem [shape: f32[2,4,256], index: 0, kind: input, shape index: {}]
  %s1 = inlined_call_operand.vmem [shape: f32[8,256], index: 1, kind: input, shape index: {}]
  %s2 = inlined_call_operand.vmem [shape: f32[2,4], index: 2, kind: input, shape index: {}]
  %s3 = inlined_call_operand.vmem [shape: f32[2,1], index: 3, kind: input, shape index: {}]
  %s4 = inlined_call_operand.vmem [shape: f32[8,2], index: 4, kind: input, shape index: {}]
  %s5 = inlined_call_operand.vmem [shape: f32[8,2], index: 5, kind: input, shape index: {}]
  %s6 = inlined_call_operand.vmem [shape: f32[8,2], index: 6, kind: input, shape index: {}]
  %s7 = inlined_call_operand.vmem [shape: f32[8,2], index: 7, kind: input, shape index: {}]
  %s8 = inlined_call_operand.vmem [shape: f32[8,1], index: 8, kind: input, shape index: {}]
  %s9 = inlined_call_operand.hbm [shape: f32[2,8,256], index: 9, kind: output, shape index: {}]
  %s10 = sld [smem:[#allocation0]]
  $region69: #{tpu_custom_call.1} parent=0
    _
  %s12 = ssub.s32 1, %s10
  %s13 = scalar_select 0, %s12, %s10
  $region1: #{tpu_custom_call.1} parent=0
    #allocation2 [shape = 'u8[16384]{0}', space=vmem, size = 0x4000, scoped, tag = 'output window, operand 0']
    #allocation3 [shape = 's32[2]{0}', space=sflag, size = 0x8, scoped, tag = 'scoped memory for tpu_custom_call.1']
    %14 = vsyncpa [#allocation3], 0
    %s15 = scalar_lea.sflag [#allocation3], 1
    %16 = vsyncpa %s15, 0
    loop: start=0, step=1, limit=4
    $region2: #{tpu_custom_call.1} parent=1 // loop_pre_header
      _
    $region3: #{tpu_custom_call.1} parent=1 // loop_header
      %s18 = sphi 0, %s22
      %p19 = scmp.ge.s32.totalorder %s18, 4
      %s28 = sphi 0, %s30
      %s31 = sphi 0, %s28
      %s32 = sphi 0, %s31
      %s48 = sphi 0, %s32
      %s52 = sphi 0, %s52
      %s54 = sphi 0, %s52
      %s55 = sphi 0, %s54
      %s69 = sphi 0, %s55
      %s73 = sphi 0, %s73
      %s75 = sphi 0, %s73
      %s76 = sphi 0, %s75
      %s90 = sphi 0, %s76
      %s94 = sphi 0, %s94
      %s96 = sphi 0, %s94
      %s97 = sphi 0, %s96
      %s111 = sphi 0, %s97
      %s115 = sphi 0, %s115
      %s117 = sphi 0, %s115
      %s118 = sphi 0, %s117
      %s132 = sphi 0, %s118
      %s136 = sphi 0, %s136
      %s138 = sphi 0, %s136
      %s139 = sphi 0, %s138
      %s153 = sphi 0, %s139
      %s157 = sphi 0, %s157
      %s159 = sphi 0, %s157
      %s160 = sphi 0, %s159
      %s174 = sphi 0, %s160
      %s178 = sphi 0, %s178
      %s180 = sphi 0, %s178
      %s181 = sphi 0, %s180
      %s195 = sphi 0, %s181
      %s199 = sphi 0, %s199
      %s201 = sphi 0, %s199
      %s202 = sphi 0, %s201
      %s216 = sphi 0, %s202
      %s222 = sphi 0, %s224
      %s225 = sphi 0, %s222
      %s226 = sphi 0, %s225
      %s242 = sphi 0, %s226
    $region4: #{tpu_custom_call.1} parent=1 // loop_header_branch
      %21 = sbr.rel (%p19) target = $region8
    $region5: #{tpu_custom_call.1} parent=1 // loop_body
      %s23 = ssub.s32 %s18, 1
      %s24 = ssub.s32 %s18, 2
      %s25 = sadd.s32 %s18, 1
      %s26 = ssub.s32 %s18, %s25
      %p27 = scmp.eq.s32.totalorder %s26, 0
      %s29 = sadd.s32 %s28, 1
      %s30 = scalar_select %p27, %s28, %s29
      %p33 = pneg %p27
      %p34 = scmp.eq.s32.totalorder %s18, 1
      %p35 = por %p33, %p34
      %p36 = scmp.ne.s32.totalorder %s28, %s31
      %p37 = scmp.eq.s32.totalorder %s18, 0
      %p38 = por %p36, %p37
      %p39 = scmp.ne.s32.totalorder %s28, %s31
      %p40 = scmp.eq.s32.totalorder %s23, 1
      %p41 = por %p39, %p40
      %p42 = scmp.ne.s32.totalorder %s31, %s32
      %p43 = scmp.eq.s32.totalorder %s23, 0
      %p44 = por %p42, %p43
      %p45 = scmp.ne.s32.totalorder %s31, %s32
      %p46 = scmp.eq.s32.totalorder %s24, 1
      %p47 = por %p45, %p46
      %p49 = scmp.ne.s32.totalorder %s32, %s48
      %p50 = scmp.eq.s32.totalorder %s24, 0
      %p51 = por %p49, %p50
      %s53 = sadd.s32 %s52, 1
      %p56 = scmp.eq.s32.totalorder %s18, 1
      %p57 = scmp.ne.s32.totalorder %s52, %s54
      %p58 = scmp.eq.s32.totalorder %s18, 0
      %p59 = por %p57, %p58
      %p60 = scmp.ne.s32.totalorder %s52, %s54
      %p61 = scmp.eq.s32.totalorder %s23, 1
      %p62 = por %p60, %p61
      %p63 = scmp.ne.s32.totalorder %s54, %s55
      %p64 = scmp.eq.s32.totalorder %s23, 0
      %p65 = por %p63, %p64
      %p66 = scmp.ne.s32.totalorder %s54, %s55
      %p67 = scmp.eq.s32.totalorder %s24, 1
      %p68 = por %p66, %p67
      %p70 = scmp.ne.s32.totalorder %s55, %s69
      %p71 = scmp.eq.s32.totalorder %s24, 0
      %p72 = por %p70, %p71
      %s74 = sadd.s32 %s73, 1
      %p77 = scmp.eq.s32.totalorder %s18, 1
      %p78 = scmp.ne.s32.totalorder %s73, %s75
      %p79 = scmp.eq.s32.totalorder %s18, 0
      %p80 = por %p78, %p79
      %p81 = scmp.ne.s32.totalorder %s73, %s75
      %p82 = scmp.eq.s32.totalorder %s23, 1
      %p83 = por %p81, %p82
      %p84 = scmp.ne.s32.totalorder %s75, %s76
      %p85 = scmp.eq.s32.totalorder %s23, 0
      %p86 = por %p84, %p85
      %p87 = scmp.ne.s32.totalorder %s75, %s76
      %p88 = scmp.eq.s32.totalorder %s24, 1
      %p89 = por %p87, %p88
      %p91 = scmp.ne.s32.totalorder %s76, %s90
      %p92 = scmp.eq.s32.totalorder %s24, 0
      %p93 = por %p91, %p92
      %s95 = sadd.s32 %s94, 1
      %p98 = scmp.eq.s32.totalorder %s18, 1
      %p99 = scmp.ne.s32.totalorder %s94, %s96
      %p100 = scmp.eq.s32.totalorder %s18, 0
      %p101 = por %p99, %p100
      %p102 = scmp.ne.s32.totalorder %s94, %s96
      %p103 = scmp.eq.s32.totalorder %s23, 1
      %p104 = por %p102, %p103
      %p105 = scmp.ne.s32.totalorder %s96, %s97
      %p106 = scmp.eq.s32.totalorder %s23, 0
      %p107 = por %p105, %p106
      %p108 = scmp.ne.s32.totalorder %s96, %s97
      %p109 = scmp.eq.s32.totalorder %s24, 1
      %p110 = por %p108, %p109
      %p112 = scmp.ne.s32.totalorder %s97, %s111
      %p113 = scmp.eq.s32.totalorder %s24, 0
      %p114 = por %p112, %p113
      %s116 = sadd.s32 %s115, 1
      %p119 = scmp.eq.s32.totalorder %s18, 1
      %p120 = scmp.ne.s32.totalorder %s115, %s117
      %p121 = scmp.eq.s32.totalorder %s18, 0
      %p122 = por %p120, %p121
      %p123 = scmp.ne.s32.totalorder %s115, %s117
      %p124 = scmp.eq.s32.totalorder %s23, 1
      %p125 = por %p123, %p124
      %p126 = scmp.ne.s32.totalorder %s117, %s118
      %p127 = scmp.eq.s32.totalorder %s23, 0
      %p128 = por %p126, %p127
      %p129 = scmp.ne.s32.totalorder %s117, %s118
      %p130 = scmp.eq.s32.totalorder %s24, 1
      %p131 = por %p129, %p130
      %p133 = scmp.ne.s32.totalorder %s118, %s132
      %p134 = scmp.eq.s32.totalorder %s24, 0
      %p135 = por %p133, %p134
      %s137 = sadd.s32 %s136, 1
      %p140 = scmp.eq.s32.totalorder %s18, 1
      %p141 = scmp.ne.s32.totalorder %s136, %s138
      %p142 = scmp.eq.s32.totalorder %s18, 0
      %p143 = por %p141, %p142
      %p144 = scmp.ne.s32.totalorder %s136, %s138
      %p145 = scmp.eq.s32.totalorder %s23, 1
      %p146 = por %p144, %p145
      %p147 = scmp.ne.s32.totalorder %s138, %s139
      %p148 = scmp.eq.s32.totalorder %s23, 0
      %p149 = por %p147, %p148
      %p150 = scmp.ne.s32.totalorder %s138, %s139
      %p151 = scmp.eq.s32.totalorder %s24, 1
      %p152 = por %p150, %p151
      %p154 = scmp.ne.s32.totalorder %s139, %s153
      %p155 = scmp.eq.s32.totalorder %s24, 0
      %p156 = por %p154, %p155
      %s158 = sadd.s32 %s157, 1
      %p161 = scmp.eq.s32.totalorder %s18, 1
      %p162 = scmp.ne.s32.totalorder %s157, %s159
      %p163 = scmp.eq.s32.totalorder %s18, 0
      %p164 = por %p162, %p163
      %p165 = scmp.ne.s32.totalorder %s157, %s159
      %p166 = scmp.eq.s32.totalorder %s23, 1
      %p167 = por %p165, %p166
      %p168 = scmp.ne.s32.totalorder %s159, %s160
      %p169 = scmp.eq.s32.totalorder %s23, 0
      %p170 = por %p168, %p169
      %p171 = scmp.ne.s32.totalorder %s159, %s160
      %p172 = scmp.eq.s32.totalorder %s24, 1
      %p173 = por %p171, %p172
      %p175 = scmp.ne.s32.totalorder %s160, %s174
      %p176 = scmp.eq.s32.totalorder %s24, 0
      %p177 = por %p175, %p176
      %s179 = sadd.s32 %s178, 1
      %p182 = scmp.eq.s32.totalorder %s18, 1
      %p183 = scmp.ne.s32.totalorder %s178, %s180
      %p184 = scmp.eq.s32.totalorder %s18, 0
      %p185 = por %p183, %p184
      %p186 = scmp.ne.s32.totalorder %s178, %s180
      %p187 = scmp.eq.s32.totalorder %s23, 1
      %p188 = por %p186, %p187
      %p189 = scmp.ne.s32.totalorder %s180, %s181
      %p190 = scmp.eq.s32.totalorder %s23, 0
      %p191 = por %p189, %p190
      %p192 = scmp.ne.s32.totalorder %s180, %s181
      %p193 = scmp.eq.s32.totalorder %s24, 1
      %p194 = por %p192, %p193
      %p196 = scmp.ne.s32.totalorder %s181, %s195
      %p197 = scmp.eq.s32.totalorder %s24, 0
      %p198 = por %p196, %p197
      %s200 = sadd.s32 %s199, 1
      %p203 = scmp.eq.s32.totalorder %s18, 1
      %p204 = scmp.ne.s32.totalorder %s199, %s201
      %p205 = scmp.eq.s32.totalorder %s18, 0
      %p206 = por %p204, %p205
      %p207 = scmp.ne.s32.totalorder %s199, %s201
      %p208 = scmp.eq.s32.totalorder %s23, 1
      %p209 = por %p207, %p208
      %p210 = scmp.ne.s32.totalorder %s201, %s202
      %p211 = scmp.eq.s32.totalorder %s23, 0
      %p212 = por %p210, %p211
      %p213 = scmp.ne.s32.totalorder %s201, %s202
      %p214 = scmp.eq.s32.totalorder %s24, 1
      %p215 = por %p213, %p214
      %p217 = scmp.ne.s32.totalorder %s202, %s216
      %p218 = scmp.eq.s32.totalorder %s24, 0
      %p219 = por %p217, %p218
      %s220 = ssub.s32 %s18, %s25
      %p221 = scmp.eq.s32.totalorder %s220, 0
      %s223 = sadd.s32 %s222, 1
      %s224 = scalar_select %p221, %s222, %s223
      %p227 = pneg %p221
      %p228 = scmp.eq.s32.totalorder %s18, 1
      %p229 = por %p227, %p228
      %p230 = scmp.ne.s32.totalorder %s222, %s225
      %p231 = scmp.eq.s32.totalorder %s18, 0
      %p232 = por %p230, %p231
      %p233 = scmp.ne.s32.totalorder %s222, %s225
      %p234 = scmp.eq.s32.totalorder %s23, 1
      %p235 = por %p233, %p234
      %p236 = scmp.ne.s32.totalorder %s225, %s226
      %p237 = scmp.eq.s32.totalorder %s23, 0
      %p238 = por %p236, %p237
      %p239 = scmp.ne.s32.totalorder %s225, %s226
      %p240 = scmp.eq.s32.totalorder %s24, 1
      %p241 = por %p239, %p240
      %p243 = scmp.ne.s32.totalorder %s226, %s242
      %p244 = scmp.eq.s32.totalorder %s24, 0
      %p245 = por %p243, %p244
      %p246 = scmp.le.s32.totalorder 1, %s18
      %p247 = scmp.lt.s32.totalorder %s18, 3
      %p248 = pnand %p246, %p247
      %p249 = pneg %p248
      // Predicated region
      $region9: #{tpu_custom_call.1} parent=5 // pred_check
        _
      $region10: #{tpu_custom_call.1} parent=5 // pred_check_branch
        %251 = sbr.rel (%p248) target = $region12
      $region11: #{tpu_custom_call.1} parent=5 // pred_region
        %s252 = ssub.s32 %s18, 1
        // Predicated region
        $region13: #{tpu_custom_call.1} parent=11 // pred_check
          %p253 = pneg %p65
        $region14: #{tpu_custom_call.1} parent=11 // pred_check_branch
          %255 = sbr.rel (%p253) target = $region16
        $region15: #{tpu_custom_call.1} parent=11 // pred_region
          _
        $region16: #{tpu_custom_call.1} parent=11 // pred_fallthru
          _
        // Predicated region
        $region17: #{tpu_custom_call.1} parent=11 // pred_check
          %p256 = pneg %p86
        $region18: #{tpu_custom_call.1} parent=11 // pred_check_branch
          %258 = sbr.rel (%p256) target = $region20
        $region19: #{tpu_custom_call.1} parent=11 // pred_region
          _
        $region20: #{tpu_custom_call.1} parent=11 // pred_fallthru
          _
        // Predicated region
        $region21: #{tpu_custom_call.1} parent=11 // pred_check
          %p259 = pneg %p107
        $region22: #{tpu_custom_call.1} parent=11 // pred_check_branch
          %261 = sbr.rel (%p259) target = $region24
        $region23: #{tpu_custom_call.1} parent=11 // pred_region
          _
        $region24: #{tpu_custom_call.1} parent=11 // pred_fallthru
          _
        // Predicated region
        $region25: #{tpu_custom_call.1} parent=11 // pred_check
          %p262 = pneg %p128
        $region26: #{tpu_custom_call.1} parent=11 // pred_check_branch
          %264 = sbr.rel (%p262) target = $region28
        $region27: #{tpu_custom_call.1} parent=11 // pred_region
          _
        $region28: #{tpu_custom_call.1} parent=11 // pred_fallthru
          _
        // Predicated region
        $region29: #{tpu_custom_call.1} parent=11 // pred_check
          %p265 = pneg %p149
        $region30: #{tpu_custom_call.1} parent=11 // pred_check_branch
          %267 = sbr.rel (%p265) target = $region32
        $region31: #{tpu_custom_call.1} parent=11 // pred_region
          _
        $region32: #{tpu_custom_call.1} parent=11 // pred_fallthru
          _
        // Predicated region
        $region33: #{tpu_custom_call.1} parent=11 // pred_check
          %p268 = pneg %p170
        $region34: #{tpu_custom_call.1} parent=11 // pred_check_branch
          %270 = sbr.rel (%p268) target = $region36
        $region35: #{tpu_custom_call.1} parent=11 // pred_region
          _
        $region36: #{tpu_custom_call.1} parent=11 // pred_fallthru
          _
        // Predicated region
        $region37: #{tpu_custom_call.1} parent=11 // pred_check
          %p271 = pneg %p191
        $region38: #{tpu_custom_call.1} parent=11 // pred_check_branch
          %273 = sbr.rel (%p271) target = $region40
        $region39: #{tpu_custom_call.1} parent=11 // pred_region
          _
        $region40: #{tpu_custom_call.1} parent=11 // pred_fallthru
          _
        // Predicated region
        $region41: #{tpu_custom_call.1} parent=11 // pred_check
          %p274 = pneg %p212
        $region42: #{tpu_custom_call.1} parent=11 // pred_check_branch
          %276 = sbr.rel (%p274) target = $region44
        $region43: #{tpu_custom_call.1} parent=11 // pred_region
          _
        $region44: #{tpu_custom_call.1} parent=11 // pred_fallthru
          _
      $region12: #{tpu_custom_call.1} parent=5 // pred_fallthru
        _
      %p277 = scmp.lt.s32.totalorder %s18, 2
      // Predicated region
      $region45: #{tpu_custom_call.1} parent=5 // pred_check
        %p278 = pneg %p277
      $region46: #{tpu_custom_call.1} parent=5 // pred_check_branch
        %280 = sbr.rel (%p278) target = $region48
      $region47: #{tpu_custom_call.1} parent=5 // pred_region
        // Predicated region
        $region49: #{tpu_custom_call.1} parent=47 // pred_check
          %p281 = pneg %p38
        $region50: #{tpu_custom_call.1} parent=47 // pred_check_branch
          %283 = sbr.rel (%p281) target = $region52
        $region51: #{tpu_custom_call.1} parent=47 // pred_region
          %p284 = scmp.lt.s32.totalorder %s18, 1
          %s285 = scalar_select %p284, %s18, 1
          %s286 = smul.addr %s285, 2
          %s287 = smul.addr %s286, 4
          %s288 = scalar_lea.vmem %s0, %s287
        $region52: #{tpu_custom_call.1} parent=47 // pred_fallthru
          _
      $region48: #{tpu_custom_call.1} parent=5 // pred_fallthru
        _
      %p289 = scmp.le.s32.totalorder 1, %s18
      %p290 = scmp.lt.s32.totalorder %s18, 3
      %p291 = pnand %p289, %p290
      %p292 = pneg %p291
      // Predicated region
      $region53: #{tpu_custom_call.1} parent=5 // pred_check
        _
      $region54: #{tpu_custom_call.1} parent=5 // pred_check_branch
        %294 = sbr.rel (%p291) target = $region56
      $region55: #{tpu_custom_call.1} parent=5 // pred_region
        %s295 = ssub.s32 %s18, 1
        %p296 = scmp.lt.s32.totalorder %s23, 1
        %s297 = scalar_select %p296, %s23, 1
        %s298 = smul.addr %s297, 2
        %s299 = smul.addr %s298, 4
        %s300 = scalar_lea.vmem %s0, %s299
        %p301 = pneg %p44
        %p302 = pneg %p41
        %p303 = pneg %p65
        %p304 = pneg %p62
        %p305 = pneg %p86
        %p306 = pneg %p83
        %p307 = pneg %p107
        %p308 = pneg %p104
        %p309 = pneg %p128
        %p310 = pneg %p125
        %p311 = pneg %p149
        %p312 = pneg %p146
        %p313 = pneg %p170
        %p314 = pneg %p167
        %p315 = pneg %p191
        %p316 = pneg %p188
        %p317 = pneg %p212
        %p318 = pneg %p209
        %p319 = pneg %p238
        %p320 = pneg %p235
        %s321 = sand.u32 %s225, 1
        %s322 = scalar_lea.sflag [#allocation3], %s321
        %s323 = sand.u32 %s225, 1
        %s324 = smul.addr %s323, 16
        %s325 = scalar_lea.vmem [#allocation2], %s324
        %p326 = scmp.lt.s32.totalorder %s23, 1
        %s327 = scalar_select %p326, %s23, 1
        %s328 = smul.addr %s327, 2
        %s329 = smul.addr %s328, 4
        %s330 = scalar_lea.vmem %s0, %s329
        %v331 = vld [vmem:[%s330] sm:$0xff]
        %v332 = vld [vmem:[%s2] sm:$0x3]
        %v333 = vld [vmem:[%s3] sm:$0x3]
        %335 = vset.pattern.permute.xlu0 0
        %336 = vperm.xlu0 %335, %v333
        %v337 = vpop.permute.xlu0 %336
        %v340 = vcombine.high %v331, %v331
        %vm341 = vcmask 31744
        %v343 = vsel %vm341, %v332, 0
        %vm345 = vcmask 1043456
        %v346 = vsel %vm345, %v331, 0
        %v348 = vsel %vm345, %v340, 0
        %350 = vmatprep.subr.mxu0 %v348
        %351 = vmatpush1.msra.mxu0 %v346
        %352 = vmatprep.subr.mxu0 0.0
        %353 = vmatpush1.msra.mxu0 0.0
        %354 = vmatprep.subr.mxu0 0.0
        %355 = vmatpush1.msra.mxu0 0.0
        %356 = vmatprep.subr.mxu0 0.0
        %357 = vmatpush1.msra.mxu0 0.0
        %358 = vmatprep.subr.mxu0 0.0
        %359 = vmatpush1.msra.mxu0 0.0
        %360 = vmatprep.subr.mxu0 0.0
        %361 = vmatpush1.msra.mxu0 0.0
        %362 = vmatprep.subr.mxu0 0.0
        %363 = vmatpush1.msra.mxu0 0.0
        %364 = vmatprep.subr.mxu0 0.0
        %365 = vmatpush1.msra.mxu0 0.0
        %366 = vmatprep.subr.mxu0 0.0
        %367 = vmatpush1.msra.mxu0 0.0
        %368 = vmatprep.subr.mxu0 0.0
        %369 = vmatpush1.msra.mxu0 0.0
        %370 = vmatprep.subr.mxu0 0.0
        %371 = vmatpush1.msra.mxu0 0.0
        %372 = vmatprep.subr.mxu0 0.0
        %373 = vmatpush1.msra.mxu0 0.0
        %374 = vmatprep.subr.mxu0 0.0
        %375 = vmatpush1.msra.mxu0 0.0
        %376 = vmatprep.subr.mxu0 0.0
        %377 = vmatpush1.msra.mxu0 0.0
        %378 = vmatprep.subr.mxu0 0.0
        %379 = vmatpush1.msra.mxu0 0.0
        %380 = vmatprep.subr.mxu0 0.0
        %381 = vmatpush1.msra.mxu0 0.0
        %382 = vmatprep.subr.mxu0 0.0
        %383 = vmatpush1.msra.mxu0 0.0
        %384 = vmatprep.subr.mxu0 0.0
        %385 = vmatpush1.msra.mxu0 0.0
        %386 = vmatprep.subr.mxu0 0.0
        %387 = vmatpush1.msra.mxu0 0.0
        %388 = vmatprep.subr.mxu0 0.0
        %389 = vmatpush1.msra.mxu0 0.0
        %390 = vmatprep.subr.mxu0 0.0
        %391 = vmatpush1.msra.mxu0 0.0
        %392 = vmatprep.subr.mxu0 0.0
        %393 = vmatpush1.msra.mxu0 0.0
        %394 = vmatprep.subr.mxu0 0.0
        %395 = vmatpush1.msra.mxu0 0.0
        %396 = vmatprep.subr.mxu0 0.0
        %397 = vmatpush1.msra.mxu0 0.0
        %398 = vmatprep.subr.mxu0 0.0
        %399 = vmatpush1.msra.mxu0 0.0
        %400 = vmatprep.subr.mxu0 0.0
        %401 = vmatpush1.msra.mxu0 0.0
        %402 = vmatprep.subr.mxu0 0.0
        %403 = vmatpush1.msra.mxu0 0.0
        %404 = vmatprep.subr.mxu0 0.0
        %405 = vmatpush1.msra.mxu0 0.0
        %406 = vmatprep.subr.mxu0 0.0
        %407 = vmatpush1.msra.mxu0 0.0
        %408 = vmatprep.subr.mxu0 0.0
        %409 = vmatpush1.msra.mxu0 0.0
        %410 = vmatprep.subr.mxu0 0.0
        %411 = vmatpush1.msra.mxu0 0.0
        %412 = vmatprep.subr.mxu0 0.0
        %413 = vmatpush1.msra.mxu0 0.0
        %414 = vmatprep.mubr.f32.mxu0 0.0
        %415 = vmatmul.mubr.f32.gmra.mrb[0].mxu0 %v343
        %v416 = vpop.f32.mrb[0].mxu0
        %v417 = vadd.f32 %v337, %v416
        %v418 = vpop.f32.mrb[0].mxu0
        %v419 = vadd.f32 %v337, %v418
        %420 = vdwg.mxu0
        %v421 = vxor.u32 %v417, 2147483648
        %v422 = vxor.u32 %v419, 2147483648
        %v423 = vmul.f32 %v421, 1.442695
        %v424 = vpow.pop %v423
        %v425 = vmul.f32 %v422, 1.442695
        %v426 = vpow.pop %v425
        %v427 = vadd.f32 %v424, 1.0
        %v428 = vadd.f32 %v426, 1.0
        %v429 = vrcp.pop %v427
        %v430 = vmul.f32 1.0, %v429
        %v431 = vrcp.pop %v428
        %v432 = vmul.f32 1.0, %v431
        %v433 = vmul.f32 %v417, %v430
        %v434 = vmul.f32 %v419, %v432
        %v435 = vld [vmem:[%s1] sm:$0xff]
        %v436 = vld [vmem:[%s1 + $0x8] sm:$0xff]
        %v437 = vld [vmem:[%s4] sm:$0xff]
        %438 = vrot.lane.b32.xlu0 %v433, 2
        %v439 = vpop.permute.xlu0 %438
        %440 = vrot.lane.b32.xlu0 %v434, 2
        %v441 = vpop.permute.xlu0 %440
        %v442 = vlaneseq
        %v443 = vand.u32 %v442, 127
        %vm444 = vcmp.lt.s32.totalorder %v443, 2
        %v445 = vsel %vm444, %v439, %v441
        %v446 = vsel %vm444, %v441, %v439
        %v447 = vlaneseq
        %v448 = vshrl.u32 %v447, 7
        %v449 = vsub.s32 0, %v448
        %v450 = vrot.slane %v435, %v449
        %v451 = vlaneseq
        %v452 = vshrl.u32 %v451, 7
        %v453 = vsub.s32 0, %v452
        %v454 = vrot.slane %v436, %v453
        %v455 = vadd.f32 %v446, %v450
        %v456 = vadd.f32 %v445, %v454
        %v457 = vmax.f32 %v433, %v455
        %v458 = vmax.f32 %v434, %v456
        %459 = vrot.lane.b32.xlu0 %v433, 1
        %v460 = vpop.permute.xlu0 %459
        %461 = vrot.lane.b32.xlu0 %v434, 1
        %v462 = vpop.permute.xlu0 %461
        %vm463 = vcmp.lt.s32.totalorder %v443, 1
        %v464 = vsel %vm463, %v460, %v462
        %v465 = vsel %vm463, %v462, %v460
        %v466 = vlaneseq
        %v467 = vshrl.u32 %v466, 7
        %v468 = vsub.s32 1, %v467
        %v469 = vrot.slane %v435, %v468
        %v470 = vlaneseq
        %v471 = vshrl.u32 %v470, 7
        %v472 = vsub.s32 1, %v471
        %v473 = vrot.slane %v436, %v472
        %v474 = vadd.f32 %v465, %v469
        %v475 = vadd.f32 %v464, %v473
        %v476 = vmax.f32 %v457, %v474
        %v477 = vmax.f32 %v458, %v475
        %478 = vrot.lane.b32.xlu0 %v433, 127
        %v479 = vpop.permute.xlu0 %478
        %480 = vrot.lane.b32.xlu0 %v434, 127
        %v481 = vpop.permute.xlu0 %480
        %vm482 = vcmp.lt.s32.totalorder %v443, 127
        %v483 = vsel %vm482, %v479, %v481
        %v484 = vsel %vm482, %v481, %v479
        %v485 = vlaneseq
        %v486 = vshrl.u32 %v485, 7
        %v487 = vsub.s32 2, %v486
        %v488 = vrot.slane %v435, %v487
        %v489 = vlaneseq
        %v490 = vshrl.u32 %v489, 7
        %v491 = vsub.s32 2, %v490
        %v492 = vrot.slane %v436, %v491
        %v493 = vadd.f32 %v483, %v488
        %v494 = vadd.f32 %v484, %v492
        %v495 = vmax.f32 %v476, %v493
        %v496 = vmax.f32 %v477, %v494
        %497 = vrot.lane.b32.xlu0 %v433, 126
        %v498 = vpop.permute.xlu0 %497
        %499 = vrot.lane.b32.xlu0 %v434, 126
        %v500 = vpop.permute.xlu0 %499
        %vm501 = vcmp.lt.s32.totalorder %v443, 126
        %v502 = vsel %vm501, %v498, %v500
        %v503 = vsel %vm501, %v500, %v498
        %v504 = vlaneseq
        %v505 = vshrl.u32 %v504, 7
        %v506 = vsub.s32 3, %v505
        %v507 = vrot.slane %v435, %v506
        %v508 = vlaneseq
        %v509 = vshrl.u32 %v508, 7
        %v510 = vsub.s32 3, %v509
        %v511 = vrot.slane %v436, %v510
        %v512 = vadd.f32 %v502, %v507
        %v513 = vadd.f32 %v503, %v511
        %v514 = vmax.f32 %v495, %v512
        %v515 = vmax.f32 %v496, %v513
        %516 = vrot.lane.b32.xlu0 %v514, 32
        %v517 = vpop.permute.xlu0 %516
        %518 = vrot.lane.b32.xlu0 %v515, 32
        %v519 = vpop.permute.xlu0 %518
        %vm520 = vcmp.lt.s32.totalorder %v443, 32
        %v521 = vsel %vm520, %v517, %v519
        %v522 = vsel %vm520, %v519, %v517
        %v523 = vlaneseq
        %v524 = vshrl.u32 %v523, 7
        %v525 = vsub.s32 4, %v524
        %v526 = vrot.slane %v435, %v525
        %v527 = vlaneseq
        %v528 = vshrl.u32 %v527, 7
        %v529 = vsub.s32 4, %v528
        %v530 = vrot.slane %v436, %v529
        %v531 = vadd.f32 %v522, %v526
        %v532 = vadd.f32 %v521, %v530
        %v533 = vmax.f32 %v514, %v531
        %v534 = vmax.f32 %v515, %v532
        %535 = vrot.lane.b32.xlu0 %v514, 16
        %v536 = vpop.permute.xlu0 %535
        %537 = vrot.lane.b32.xlu0 %v515, 16
        %v538 = vpop.permute.xlu0 %537
        %vm539 = vcmp.lt.s32.totalorder %v443, 16
        %v540 = vsel %vm539, %v536, %v538
        %v541 = vsel %vm539, %v538, %v536
        %v542 = vlaneseq
        %v543 = vshrl.u32 %v542, 7
        %v544 = vsub.s32 5, %v543
        %v545 = vrot.slane %v435, %v544
        %v546 = vlaneseq
        %v547 = vshrl.u32 %v546, 7
        %v548 = vsub.s32 5, %v547
        %v549 = vrot.slane %v436, %v548
        %v550 = vadd.f32 %v541, %v545
        %v551 = vadd.f32 %v540, %v549
        %v552 = vmax.f32 %v533, %v550
        %v553 = vmax.f32 %v534, %v551
        %554 = vrot.lane.b32.xlu0 %v514, 112
        %v555 = vpop.permute.xlu0 %554
        %556 = vrot.lane.b32.xlu0 %v515, 112
        %v557 = vpop.permute.xlu0 %556
        %vm558 = vcmp.lt.s32.totalorder %v443, 112
        %v559 = vsel %vm558, %v555, %v557
        %v560 = vsel %vm558, %v557, %v555
        %v561 = vlaneseq
        %v562 = vshrl.u32 %v561, 7
        %v563 = vsub.s32 6, %v562
        %v564 = vrot.slane %v435, %v563
        %v565 = vlaneseq
        %v566 = vshrl.u32 %v565, 7
        %v567 = vsub.s32 6, %v566
        %v568 = vrot.slane %v436, %v567
        %v569 = vadd.f32 %v559, %v564
        %v570 = vadd.f32 %v560, %v568
        %v571 = vmax.f32 %v552, %v569
        %v572 = vmax.f32 %v553, %v570
        %573 = vrot.lane.b32.xlu0 %v514, 96
        %v574 = vpop.permute.xlu0 %573
        %575 = vrot.lane.b32.xlu0 %v515, 96
        %v576 = vpop.permute.xlu0 %575
        %vm577 = vcmp.lt.s32.totalorder %v443, 96
        %v578 = vsel %vm577, %v574, %v576
        %v579 = vsel %vm577, %v576, %v574
        %v580 = vlaneseq
        %v581 = vshrl.u32 %v580, 7
        %v582 = vsub.s32 7, %v581
        %v583 = vrot.slane %v435, %v582
        %v584 = vlaneseq
        %v585 = vshrl.u32 %v584, 7
        %v586 = vsub.s32 7, %v585
        %v587 = vrot.slane %v436, %v586
        %v588 = vadd.f32 %v578, %v583
        %v589 = vadd.f32 %v579, %v587
        %v590 = vmax.f32 %v571, %v588
        %v591 = vmax.f32 %v572, %v589
        %v592 = vld [vmem:[%s5] sm:$0xff]
        %vm593 = vcmask 15360
        %v595 = vsel %vm593, %v592, 0
        %vm597 = vcmask 1041408
        %v599 = vsel %vm597, %v590, 0
        %v602 = vsel %vm597, %v591, 0
        %604 = vmatprep.subr.mxu0 %v602
        %605 = vmatpush1.msra.mxu0 %v599
        %606 = vmatprep.subr.mxu0 0.0
        %607 = vmatpush1.msra.mxu0 0.0
        %608 = vmatprep.subr.mxu0 0.0
        %609 = vmatpush1.msra.mxu0 0.0
        %610 = vmatprep.subr.mxu0 0.0
        %611 = vmatpush1.msra.mxu0 0.0
        %612 = vmatprep.subr.mxu0 0.0
        %613 = vmatpush1.msra.mxu0 0.0
        %614 = vmatprep.subr.mxu0 0.0
        %615 = vmatpush1.msra.mxu0 0.0
        %616 = vmatprep.subr.mxu0 0.0
        %617 = vmatpush1.msra.mxu0 0.0
        %618 = vmatprep.subr.mxu0 0.0
        %619 = vmatpush1.msra.mxu0 0.0
        %620 = vmatprep.subr.mxu0 0.0
        %621 = vmatpush1.msra.mxu0 0.0
        %622 = vmatprep.subr.mxu0 0.0
        %623 = vmatpush1.msra.mxu0 0.0
        %624 = vmatprep.subr.mxu0 0.0
        %625 = vmatpush1.msra.mxu0 0.0
        %626 = vmatprep.subr.mxu0 0.0
        %627 = vmatpush1.msra.mxu0 0.0
        %628 = vmatprep.subr.mxu0 0.0
        %629 = vmatpush1.msra.mxu0 0.0
        %630 = vmatprep.subr.mxu0 0.0
        %631 = vmatpush1.msra.mxu0 0.0
        %632 = vmatprep.subr.mxu0 0.0
        %633 = vmatpush1.msra.mxu0 0.0
        %634 = vmatprep.subr.mxu0 0.0
        %635 = vmatpush1.msra.mxu0 0.0
        %636 = vmatprep.subr.mxu0 0.0
        %637 = vmatpush1.msra.mxu0 0.0
        %638 = vmatprep.subr.mxu0 0.0
        %639 = vmatpush1.msra.mxu0 0.0
        %640 = vmatprep.subr.mxu0 0.0
        %641 = vmatpush1.msra.mxu0 0.0
        %642 = vmatprep.subr.mxu0 0.0
        %643 = vmatpush1.msra.mxu0 0.0
        %644 = vmatprep.subr.mxu0 0.0
        %645 = vmatpush1.msra.mxu0 0.0
        %646 = vmatprep.subr.mxu0 0.0
        %647 = vmatpush1.msra.mxu0 0.0
        %648 = vmatprep.subr.mxu0 0.0
        %649 = vmatpush1.msra.mxu0 0.0
        %650 = vmatprep.subr.mxu0 0.0
        %651 = vmatpush1.msra.mxu0 0.0
        %652 = vmatprep.subr.mxu0 0.0
        %653 = vmatpush1.msra.mxu0 0.0
        %654 = vmatprep.subr.mxu0 0.0
        %655 = vmatpush1.msra.mxu0 0.0
        %656 = vmatprep.subr.mxu0 0.0
        %657 = vmatpush1.msra.mxu0 0.0
        %658 = vmatprep.subr.mxu0 0.0
        %659 = vmatpush1.msra.mxu0 0.0
        %660 = vmatprep.subr.mxu0 0.0
        %661 = vmatpush1.msra.mxu0 0.0
        %662 = vmatprep.subr.mxu0 0.0
        %663 = vmatpush1.msra.mxu0 0.0
        %664 = vmatprep.subr.mxu0 0.0
        %665 = vmatpush1.msra.mxu0 0.0
        %666 = vmatprep.subr.mxu0 0.0
        %667 = vmatpush1.msra.mxu0 0.0
        %668 = vmatprep.mubr.f32.mxu0 0.0
        %669 = vmatmul.mubr.f32.gmra.mrb[0].mxu0 %v595
        %v670 = vpop.f32.mrb[0].mxu0
        %v671 = vadd.f32 0.0, %v670
        %v672 = vpop.f32.mrb[0].mxu0
        %v673 = vadd.f32 0.0, %v672
        %674 = vdwg.mxu0
        %v676 = vsel %vm593, %v437, 0
        %v679 = vsel %vm597, %v433, 0
        %v682 = vsel %vm597, %v434, 0
        %684 = vmatprep.subr.mxu0 %v682
        %685 = vmatpush1.msra.mxu0 %v679
        %686 = vmatprep.subr.mxu0 0.0
        %687 = vmatpush1.msra.mxu0 0.0
        %688 = vmatprep.subr.mxu0 0.0
        %689 = vmatpush1.msra.mxu0 0.0
        %690 = vmatprep.subr.mxu0 0.0
        %691 = vmatpush1.msra.mxu0 0.0
        %692 = vmatprep.subr.mxu0 0.0
        %693 = vmatpush1.msra.mxu0 0.0
        %694 = vmatprep.subr.mxu0 0.0
        %695 = vmatpush1.msra.mxu0 0.0
        %696 = vmatprep.subr.mxu0 0.0
        %697 = vmatpush1.msra.mxu0 0.0
        %698 = vmatprep.subr.mxu0 0.0
        %699 = vmatpush1.msra.mxu0 0.0
        %700 = vmatprep.subr.mxu0 0.0
        %701 = vmatpush1.msra.mxu0 0.0
        %702 = vmatprep.subr.mxu0 0.0
        %703 = vmatpush1.msra.mxu0 0.0
        %704 = vmatprep.subr.mxu0 0.0
        %705 = vmatpush1.msra.mxu0 0.0
        %706 = vmatprep.subr.mxu0 0.0
        %707 = vmatpush1.msra.mxu0 0.0
        %708 = vmatprep.subr.mxu0 0.0
        %709 = vmatpush1.msra.mxu0 0.0
        %710 = vmatprep.subr.mxu0 0.0
        %711 = vmatpush1.msra.mxu0 0.0
        %712 = vmatprep.subr.mxu0 0.0
        %713 = vmatpush1.msra.mxu0 0.0
        %714 = vmatprep.subr.mxu0 0.0
        %715 = vmatpush1.msra.mxu0 0.0
        %716 = vmatprep.subr.mxu0 0.0
        %717 = vmatpush1.msra.mxu0 0.0
        %718 = vmatprep.subr.mxu0 0.0
        %719 = vmatpush1.msra.mxu0 0.0
        %720 = vmatprep.subr.mxu0 0.0
        %721 = vmatpush1.msra.mxu0 0.0
        %722 = vmatprep.subr.mxu0 0.0
        %723 = vmatpush1.msra.mxu0 0.0
        %724 = vmatprep.subr.mxu0 0.0
        %725 = vmatpush1.msra.mxu0 0.0
        %726 = vmatprep.subr.mxu0 0.0
        %727 = vmatpush1.msra.mxu0 0.0
        %728 = vmatprep.subr.mxu0 0.0
        %729 = vmatpush1.msra.mxu0 0.0
        %730 = vmatprep.subr.mxu0 0.0
        %731 = vmatpush1.msra.mxu0 0.0
        %732 = vmatprep.subr.mxu0 0.0
        %733 = vmatpush1.msra.mxu0 0.0
        %734 = vmatprep.subr.mxu0 0.0
        %735 = vmatpush1.msra.mxu0 0.0
        %736 = vmatprep.subr.mxu0 0.0
        %737 = vmatpush1.msra.mxu0 0.0
        %738 = vmatprep.subr.mxu0 0.0
        %739 = vmatpush1.msra.mxu0 0.0
        %740 = vmatprep.subr.mxu0 0.0
        %741 = vmatpush1.msra.mxu0 0.0
        %742 = vmatprep.subr.mxu0 0.0
        %743 = vmatpush1.msra.mxu0 0.0
        %744 = vmatprep.subr.mxu0 0.0
        %745 = vmatpush1.msra.mxu0 0.0
        %746 = vmatprep.subr.mxu0 0.0
        %747 = vmatpush1.msra.mxu0 0.0
        %748 = vmatprep.mubr.f32.mxu0 0.0
        %749 = vmatmul.mubr.f32.gmra.mrb[0].mxu0 %v676
        %v750 = vpop.f32.mrb[0].mxu0
        %v751 = vadd.f32 %v671, %v750
        %v752 = vpop.f32.mrb[0].mxu0
        %v753 = vadd.f32 %v673, %v752
        %754 = vdwg.mxu0
        %755 = vrot.lane.b32.xlu0 %v590, 2
        %v756 = vpop.permute.xlu0 %755
        %757 = vrot.lane.b32.xlu0 %v591, 2
        %v758 = vpop.permute.xlu0 %757
        %v759 = vsel %vm444, %v756, %v758
        %v760 = vsel %vm444, %v758, %v756
        %v761 = vadd.f32 %v760, %v450
        %v762 = vadd.f32 %v759, %v454
        %v763 = vmax.f32 %v590, %v761
        %v764 = vmax.f32 %v591, %v762
        %765 = vrot.lane.b32.xlu0 %v590, 1
        %v766 = vpop.permute.xlu0 %765
        %767 = vrot.lane.b32.xlu0 %v591, 1
        %v768 = vpop.permute.xlu0 %767
        %v769 = vsel %vm463, %v766, %v768
        %v770 = vsel %vm463, %v768, %v766
        %v771 = vadd.f32 %v770, %v469
        %v772 = vadd.f32 %v769, %v473
        %v773 = vmax.f32 %v763, %v771
        %v774 = vmax.f32 %v764, %v772
        %775 = vrot.lane.b32.xlu0 %v590, 127
        %v776 = vpop.permute.xlu0 %775
        %777 = vrot.lane.b32.xlu0 %v591, 127
        %v778 = vpop.permute.xlu0 %777
        %v779 = vsel %vm482, %v776, %v778
        %v780 = vsel %vm482, %v778, %v776
        %v781 = vadd.f32 %v779, %v488
        %v782 = vadd.f32 %v780, %v492
        %v783 = vmax.f32 %v773, %v781
        %v784 = vmax.f32 %v774, %v782
        %785 = vrot.lane.b32.xlu0 %v590, 126
        %v786 = vpop.permute.xlu0 %785
        %787 = vrot.lane.b32.xlu0 %v591, 126
        %v788 = vpop.permute.xlu0 %787
        %v789 = vsel %vm501, %v786, %v788
        %v790 = vsel %vm501, %v788, %v786
        %v791 = vadd.f32 %v789, %v507
        %v792 = vadd.f32 %v790, %v511
        %v793 = vmax.f32 %v783, %v791
        %v794 = vmax.f32 %v784, %v792
        %795 = vrot.lane.b32.xlu0 %v793, 32
        %v796 = vpop.permute.xlu0 %795
        %797 = vrot.lane.b32.xlu0 %v794, 32
        %v798 = vpop.permute.xlu0 %797
        %v799 = vsel %vm520, %v796, %v798
        %v800 = vsel %vm520, %v798, %v796
        %v801 = vadd.f32 %v800, %v526
        %v802 = vadd.f32 %v799, %v530
        %v803 = vmax.f32 %v793, %v801
        %v804 = vmax.f32 %v794, %v802
        %805 = vrot.lane.b32.xlu0 %v793, 16
        %v806 = vpop.permute.xlu0 %805
        %807 = vrot.lane.b32.xlu0 %v794, 16
        %v808 = vpop.permute.xlu0 %807
        %v809 = vsel %vm539, %v806, %v808
        %v810 = vsel %vm539, %v808, %v806
        %v811 = vadd.f32 %v810, %v545
        %v812 = vadd.f32 %v809, %v549
        %v813 = vmax.f32 %v803, %v811
        %v814 = vmax.f32 %v804, %v812
        %815 = vrot.lane.b32.xlu0 %v793, 112
        %v816 = vpop.permute.xlu0 %815
        %817 = vrot.lane.b32.xlu0 %v794, 112
        %v818 = vpop.permute.xlu0 %817
        %v819 = vsel %vm558, %v816, %v818
        %v820 = vsel %vm558, %v818, %v816
        %v821 = vadd.f32 %v819, %v564
        %v822 = vadd.f32 %v820, %v568
        %v823 = vmax.f32 %v813, %v821
        %v824 = vmax.f32 %v814, %v822
        %825 = vrot.lane.b32.xlu0 %v793, 96
        %v826 = vpop.permute.xlu0 %825
        %827 = vrot.lane.b32.xlu0 %v794, 96
        %v828 = vpop.permute.xlu0 %827
        %v829 = vsel %vm577, %v826, %v828
        %v830 = vsel %vm577, %v828, %v826
        %v831 = vadd.f32 %v829, %v583
        %v832 = vadd.f32 %v830, %v587
        %v833 = vmax.f32 %v823, %v831
        %v834 = vmax.f32 %v824, %v832
        %v835 = vld [vmem:[%s6] sm:$0xff]
        %v837 = vsel %vm593, %v835, 0
        %v840 = vsel %vm597, %v833, 0
        %v843 = vsel %vm597, %v834, 0
        %845 = vmatprep.subr.mxu0 %v843
        %846 = vmatpush1.msra.mxu0 %v840
        %847 = vmatprep.subr.mxu0 0.0
        %848 = vmatpush1.msra.mxu0 0.0
        %849 = vmatprep.subr.mxu0 0.0
        %850 = vmatpush1.msra.mxu0 0.0
        %851 = vmatprep.subr.mxu0 0.0
        %852 = vmatpush1.msra.mxu0 0.0
        %853 = vmatprep.subr.mxu0 0.0
        %854 = vmatpush1.msra.mxu0 0.0
        %855 = vmatprep.subr.mxu0 0.0
        %856 = vmatpush1.msra.mxu0 0.0
        %857 = vmatprep.subr.mxu0 0.0
        %858 = vmatpush1.msra.mxu0 0.0
        %859 = vmatprep.subr.mxu0 0.0
        %860 = vmatpush1.msra.mxu0 0.0
        %861 = vmatprep.subr.mxu0 0.0
        %862 = vmatpush1.msra.mxu0 0.0
        %863 = vmatprep.subr.mxu0 0.0
        %864 = vmatpush1.msra.mxu0 0.0
        %865 = vmatprep.subr.mxu0 0.0
        %866 = vmatpush1.msra.mxu0 0.0
        %867 = vmatprep.subr.mxu0 0.0
        %868 = vmatpush1.msra.mxu0 0.0
        %869 = vmatprep.subr.mxu0 0.0
        %870 = vmatpush1.msra.mxu0 0.0
        %871 = vmatprep.subr.mxu0 0.0
        %872 = vmatpush1.msra.mxu0 0.0
        %873 = vmatprep.subr.mxu0 0.0
        %874 = vmatpush1.msra.mxu0 0.0
        %875 = vmatprep.subr.mxu0 0.0
        %876 = vmatpush1.msra.mxu0 0.0
        %877 = vmatprep.subr.mxu0 0.0
        %878 = vmatpush1.msra.mxu0 0.0
        %879 = vmatprep.subr.mxu0 0.0
        %880 = vmatpush1.msra.mxu0 0.0
        %881 = vmatprep.subr.mxu0 0.0
        %882 = vmatpush1.msra.mxu0 0.0
        %883 = vmatprep.subr.mxu0 0.0
        %884 = vmatpush1.msra.mxu0 0.0
        %885 = vmatprep.subr.mxu0 0.0
        %886 = vmatpush1.msra.mxu0 0.0
        %887 = vmatprep.subr.mxu0 0.0
        %888 = vmatpush1.msra.mxu0 0.0
        %889 = vmatprep.subr.mxu0 0.0
        %890 = vmatpush1.msra.mxu0 0.0
        %891 = vmatprep.subr.mxu0 0.0
        %892 = vmatpush1.msra.mxu0 0.0
        %893 = vmatprep.subr.mxu0 0.0
        %894 = vmatpush1.msra.mxu0 0.0
        %895 = vmatprep.subr.mxu0 0.0
        %896 = vmatpush1.msra.mxu0 0.0
        %897 = vmatprep.subr.mxu0 0.0
        %898 = vmatpush1.msra.mxu0 0.0
        %899 = vmatprep.subr.mxu0 0.0
        %900 = vmatpush1.msra.mxu0 0.0
        %901 = vmatprep.subr.mxu0 0.0
        %902 = vmatpush1.msra.mxu0 0.0
        %903 = vmatprep.subr.mxu0 0.0
        %904 = vmatpush1.msra.mxu0 0.0
        %905 = vmatprep.subr.mxu0 0.0
        %906 = vmatpush1.msra.mxu0 0.0
        %907 = vmatprep.subr.mxu0 0.0
        %908 = vmatpush1.msra.mxu0 0.0
        %909 = vmatprep.mubr.f32.mxu0 0.0
        %910 = vmatmul.mubr.f32.gmra.mrb[0].mxu0 %v837
        %v911 = vpop.f32.mrb[0].mxu0
        %v912 = vadd.f32 0.0, %v911
        %v913 = vpop.f32.mrb[0].mxu0
        %v914 = vadd.f32 0.0, %v913
        %915 = vdwg.mxu0
        %v916 = vadd.f32 %v751, %v912
        %v917 = vadd.f32 %v753, %v914
        %918 = vrot.lane.b32.xlu0 %v833, 2
        %v919 = vpop.permute.xlu0 %918
        %920 = vrot.lane.b32.xlu0 %v834, 2
        %v921 = vpop.permute.xlu0 %920
        %v922 = vsel %vm444, %v919, %v921
        %v923 = vsel %vm444, %v921, %v919
        %v924 = vadd.f32 %v923, %v450
        %v925 = vadd.f32 %v922, %v454
        %v926 = vmax.f32 %v833, %v924
        %v927 = vmax.f32 %v834, %v925
        %928 = vrot.lane.b32.xlu0 %v833, 1
        %v929 = vpop.permute.xlu0 %928
        %930 = vrot.lane.b32.xlu0 %v834, 1
        %v931 = vpop.permute.xlu0 %930
        %v932 = vsel %vm463, %v929, %v931
        %v933 = vsel %vm463, %v931, %v929
        %v934 = vadd.f32 %v933, %v469
        %v935 = vadd.f32 %v932, %v473
        %v936 = vmax.f32 %v926, %v934
        %v937 = vmax.f32 %v927, %v935
        %938 = vrot.lane.b32.xlu0 %v833, 127
        %v939 = vpop.permute.xlu0 %938
        %940 = vrot.lane.b32.xlu0 %v834, 127
        %v941 = vpop.permute.xlu0 %940
        %v942 = vsel %vm482, %v939, %v941
        %v943 = vsel %vm482, %v941, %v939
        %v944 = vadd.f32 %v942, %v488
        %v945 = vadd.f32 %v943, %v492
        %v946 = vmax.f32 %v936, %v944
        %v947 = vmax.f32 %v937, %v945
        %948 = vrot.lane.b32.xlu0 %v833, 126
        %v949 = vpop.permute.xlu0 %948
        %950 = vrot.lane.b32.xlu0 %v834, 126
        %v951 = vpop.permute.xlu0 %950
        %v952 = vsel %vm501, %v949, %v951
        %v953 = vsel %vm501, %v951, %v949
        %v954 = vadd.f32 %v952, %v507
        %v955 = vadd.f32 %v953, %v511
        %v956 = vmax.f32 %v946, %v954
        %v957 = vmax.f32 %v947, %v955
        %958 = vrot.lane.b32.xlu0 %v956, 32
        %v959 = vpop.permute.xlu0 %958
        %960 = vrot.lane.b32.xlu0 %v957, 32
        %v961 = vpop.permute.xlu0 %960
        %v962 = vsel %vm520, %v959, %v961
        %v963 = vsel %vm520, %v961, %v959
        %v964 = vadd.f32 %v963, %v526
        %v965 = vadd.f32 %v962, %v530
        %v966 = vmax.f32 %v956, %v964
        %v967 = vmax.f32 %v957, %v965
        %968 = vrot.lane.b32.xlu0 %v956, 16
        %v969 = vpop.permute.xlu0 %968
        %970 = vrot.lane.b32.xlu0 %v957, 16
        %v971 = vpop.permute.xlu0 %970
        %v972 = vsel %vm539, %v969, %v971
        %v973 = vsel %vm539, %v971, %v969
        %v974 = vadd.f32 %v973, %v545
        %v975 = vadd.f32 %v972, %v549
        %v976 = vmax.f32 %v966, %v974
        %v977 = vmax.f32 %v967, %v975
        %978 = vrot.lane.b32.xlu0 %v956, 112
        %v979 = vpop.permute.xlu0 %978
        %980 = vrot.lane.b32.xlu0 %v957, 112
        %v981 = vpop.permute.xlu0 %980
        %v982 = vsel %vm558, %v979, %v981
        %v983 = vsel %vm558, %v981, %v979
        %v984 = vadd.f32 %v982, %v564
        %v985 = vadd.f32 %v983, %v568
        %v986 = vmax.f32 %v976, %v984
        %v987 = vmax.f32 %v977, %v985
        %988 = vrot.lane.b32.xlu0 %v956, 96
        %v989 = vpop.permute.xlu0 %988
        %990 = vrot.lane.b32.xlu0 %v957, 96
        %v991 = vpop.permute.xlu0 %990
        %v992 = vsel %vm577, %v989, %v991
        %v993 = vsel %vm577, %v991, %v989
        %v994 = vadd.f32 %v992, %v583
        %v995 = vadd.f32 %v993, %v587
        %v996 = vmax.f32 %v986, %v994
        %v997 = vmax.f32 %v987, %v995
        %v998 = vld [vmem:[%s7] sm:$0xff]
        %v1000 = vsel %vm593, %v998, 0
        %v1003 = vsel %vm597, %v996, 0
        %v1006 = vsel %vm597, %v997, 0
        %1008 = vmatprep.subr.mxu0 %v1006
        %1009 = vmatpush1.msra.mxu0 %v1003
        %1010 = vmatprep.subr.mxu0 0.0
        %1011 = vmatpush1.msra.mxu0 0.0
        %1012 = vmatprep.subr.mxu0 0.0
        %1013 = vmatpush1.msra.mxu0 0.0
        %1014 = vmatprep.subr.mxu0 0.0
        %1015 = vmatpush1.msra.mxu0 0.0
        %1016 = vmatprep.subr.mxu0 0.0
        %1017 = vmatpush1.msra.mxu0 0.0
        %1018 = vmatprep.subr.mxu0 0.0
        %1019 = vmatpush1.msra.mxu0 0.0
        %1020 = vmatprep.subr.mxu0 0.0
        %1021 = vmatpush1.msra.mxu0 0.0
        %1022 = vmatprep.subr.mxu0 0.0
        %1023 = vmatpush1.msra.mxu0 0.0
        %1024 = vmatprep.subr.mxu0 0.0
        %1025 = vmatpush1.msra.mxu0 0.0
        %1026 = vmatprep.subr.mxu0 0.0
        %1027 = vmatpush1.msra.mxu0 0.0
        %1028 = vmatprep.subr.mxu0 0.0
        %1029 = vmatpush1.msra.mxu0 0.0
        %1030 = vmatprep.subr.mxu0 0.0
        %1031 = vmatpush1.msra.mxu0 0.0
        %1032 = vmatprep.subr.mxu0 0.0
        %1033 = vmatpush1.msra.mxu0 0.0
        %1034 = vmatprep.subr.mxu0 0.0
        %1035 = vmatpush1.msra.mxu0 0.0
        %1036 = vmatprep.subr.mxu0 0.0
        %1037 = vmatpush1.msra.mxu0 0.0
        %1038 = vmatprep.subr.mxu0 0.0
        %1039 = vmatpush1.msra.mxu0 0.0
        %1040 = vmatprep.subr.mxu0 0.0
        %1041 = vmatpush1.msra.mxu0 0.0
        %1042 = vmatprep.subr.mxu0 0.0
        %1043 = vmatpush1.msra.mxu0 0.0
        %1044 = vmatprep.subr.mxu0 0.0
        %1045 = vmatpush1.msra.mxu0 0.0
        %1046 = vmatprep.subr.mxu0 0.0
        %1047 = vmatpush1.msra.mxu0 0.0
        %1048 = vmatprep.subr.mxu0 0.0
        %1049 = vmatpush1.msra.mxu0 0.0
        %1050 = vmatprep.subr.mxu0 0.0
        %1051 = vmatpush1.msra.mxu0 0.0
        %1052 = vmatprep.subr.mxu0 0.0
        %1053 = vmatpush1.msra.mxu0 0.0
        %1054 = vmatprep.subr.mxu0 0.0
        %1055 = vmatpush1.msra.mxu0 0.0
        %1056 = vmatprep.subr.mxu0 0.0
        %1057 = vmatpush1.msra.mxu0 0.0
        %1058 = vmatprep.subr.mxu0 0.0
        %1059 = vmatpush1.msra.mxu0 0.0
        %1060 = vmatprep.subr.mxu0 0.0
        %1061 = vmatpush1.msra.mxu0 0.0
        %1062 = vmatprep.subr.mxu0 0.0
        %1063 = vmatpush1.msra.mxu0 0.0
        %1064 = vmatprep.subr.mxu0 0.0
        %1065 = vmatpush1.msra.mxu0 0.0
        %1066 = vmatprep.subr.mxu0 0.0
        %1067 = vmatpush1.msra.mxu0 0.0
        %1068 = vmatprep.subr.mxu0 0.0
        %1069 = vmatpush1.msra.mxu0 0.0
        %1070 = vmatprep.subr.mxu0 0.0
        %1071 = vmatpush1.msra.mxu0 0.0
        %1072 = vmatprep.mubr.f32.mxu0 0.0
        %1073 = vmatmul.mubr.f32.gmra.mrb[0].mxu0 %v1000
        %v1074 = vpop.f32.mrb[0].mxu0
        %v1075 = vadd.f32 0.0, %v1074
        %v1076 = vpop.f32.mrb[0].mxu0
        %v1077 = vadd.f32 0.0, %v1076
        %1078 = vdwg.mxu0
        %v1079 = vadd.f32 %v916, %v1075
        %v1080 = vadd.f32 %v917, %v1077
        %v1081 = vld [vmem:[%s8] sm:$0xff]
        %1083 = vset.pattern.permute.xlu0 0
        %1084 = vperm.xlu0 %1083, %v1081
        %v1085 = vpop.permute.xlu0 %1084
        %v1087 = vadd.f32 %v1079, %v1085
        %v1088 = vadd.f32 %v1080, %v1085
        %v1089 = vxor.u32 %v1087, 2147483648
        %v1090 = vxor.u32 %v1088, 2147483648
        %v1091 = vmul.f32 %v1089, 1.442695
        %v1092 = vpow.pop %v1091
        %v1093 = vmul.f32 %v1090, 1.442695
        %v1094 = vpow.pop %v1093
        %v1095 = vadd.f32 %v1092, 1.0
        %v1096 = vadd.f32 %v1094, 1.0
        %v1097 = vrcp.pop %v1095
        %v1098 = vmul.f32 1.0, %v1097
        %v1099 = vrcp.pop %v1096
        %v1100 = vmul.f32 1.0, %v1099
        %v1101 = vmul.f32 %v1087, %v1098
        %v1102 = vmul.f32 %v1088, %v1100
        %1103 = vst [vmem:[%s325] sm:$0xff] %v1101
        %1104 = vst [vmem:[%s325 + $0x8] sm:$0xff] %v1102
        %s1105 = sand.u32 %s225, 1
        %s1106 = scalar_lea.sflag [#allocation3], %s1105
        %s1107 = sand.u32 %s225, 1
        %s1108 = smul.addr %s1107, 16
        %s1109 = scalar_lea.vmem [#allocation2], %s1108
        // Predicated region
        $region57: #{tpu_custom_call.1} parent=55 // pred_check
          %p1110 = pneg %p235
        $region58: #{tpu_custom_call.1} parent=55 // pred_check_branch
          %1112 = sbr.rel (%p1110) target = $region60
        $region59: #{tpu_custom_call.1} parent=55 // pred_region
          %s1114 = ssub.s32 256, 256
          %1115 = vsyncadd %s1106, %s1114
          %s1116 = smul.addr %s23, 2
          %s1117 = smul.addr %s1116, 128
          %s1118 = scalar_lea.hbm %s9, %s1117
          %s1120 = sshll.u32 %s1109, 4
          %s1121 = int_to_ptr.vmem [resolvable:$true] %s1120
          %1123 = dma.vmem_to_hbm [thread:$0]  %s1121, 256, %s1118, %s1106
        $region60: #{tpu_custom_call.1} parent=55 // pred_fallthru
          _
      $region56: #{tpu_custom_call.1} parent=5 // pred_fallthru
        _
      %p1124 = scmp.le.s32.totalorder 2, %s18
      // Predicated region
      $region61: #{tpu_custom_call.1} parent=5 // pred_check
        %p1125 = pneg %p1124
      $region62: #{tpu_custom_call.1} parent=5 // pred_check_branch
        %1127 = sbr.rel (%p1125) target = $region64
      $region63: #{tpu_custom_call.1} parent=5 // pred_region
        %s1128 = ssub.s32 %s18, 2
        // Predicated region
        $region65: #{tpu_custom_call.1} parent=63 // pred_check
          %p1129 = pneg %p241
        $region66: #{tpu_custom_call.1} parent=63 // pred_check_branch
          %1131 = sbr.rel (%p1129) target = $region68
        $region67: #{tpu_custom_call.1} parent=63 // pred_region
          %s1132 = sand.u32 %s226, 1
          %s1133 = scalar_lea.sflag [#allocation3], %s1132
          %s1134 = sand.u32 %s226, 1
          %s1135 = smul.addr %s1134, 16
          %s1136 = scalar_lea.vmem [#allocation2], %s1135
          %1137 = dma.done %s1133, 256
        $region68: #{tpu_custom_call.1} parent=63 // pred_fallthru
          _
      $region64: #{tpu_custom_call.1} parent=5 // pred_fallthru
        _
    $region6: #{tpu_custom_call.1} parent=1 // loop_footer
      %s22 = sadd.s32 1, %s18
    $region7: #{tpu_custom_call.1} parent=1 // loop_footer_branch
      %17 = sbr.rel target = $region3
    $region8: #{tpu_custom_call.1} parent=1 // loop_exit
      _
    %1138 = vsyncpa [#allocation3], 1
    %s1139 = scalar_lea.sflag [#allocation3], 1
    %1140 = vsyncpa %s1139, 1

// kernel: tpu_custom_call.1
$region0: #{tpu_custom_call.1}
  #allocation0 [shape = 'u32[]', space=smem, size = 0x4, offset = 0x4, fixed_abs, tag = 'smem constant byte address 0x4 - core index']
  #allocation1 [shape = 'u32[144,128]{1,0:T(1,128)}', space=vmem, size = 0x12000, scoped, tag = 'internal scratch']
  %s0 = inlined_call_operand.vmem [shape: f32[2,4,256], index: 0, kind: input, shape index: {}]
  %s1 = inlined_call_operand.vmem [shape: f32[8,256], index: 1, kind: input, shape index: {}]
  %s2 = inlined_call_operand.vmem [shape: f32[2,4], index: 2, kind: input, shape index: {}]
  %s3 = inlined_call_operand.vmem [shape: f32[2,1], index: 3, kind: input, shape index: {}]
  %s4 = inlined_call_operand.vmem [shape: f32[8,2], index: 4, kind: input, shape index: {}]
  %s5 = inlined_call_operand.vmem [shape: f32[8,2], index: 5, kind: input, shape index: {}]
  %s6 = inlined_call_operand.vmem [shape: f32[8,2], index: 6, kind: input, shape index: {}]
  %s7 = inlined_call_operand.vmem [shape: f32[8,2], index: 7, kind: input, shape index: {}]
  %s8 = inlined_call_operand.vmem [shape: f32[8,1], index: 8, kind: input, shape index: {}]
  %s9 = inlined_call_operand.hbm [shape: f32[2,8,256], index: 9, kind: output, shape index: {}]
  %s10 = sld [smem:[#allocation0]]
  $region69: #{tpu_custom_call.1} parent=0
    _
  %s12 = ssub.s32 1, %s10
  %s13 = scalar_select 0, %s12, %s10
  $region1: #{tpu_custom_call.1} parent=0
    #allocation2 [shape = 'u8[16384]{0}', space=vmem, size = 0x4000, scoped, tag = 'output window, operand 0']
    #allocation3 [shape = 's32[2]{0}', space=sflag, size = 0x8, scoped, tag = 'scoped memory for tpu_custom_call.1']
    %14 = vsyncpa [#allocation3], 0
    %s15 = scalar_lea.sflag [#allocation3], 1
    %16 = vsyncpa %s15, 0
    loop: start=0, step=1, limit=4
    $region2: #{tpu_custom_call.1} parent=1 // loop_pre_header
      _
    $region3: #{tpu_custom_call.1} parent=1 // loop_header
      %s18 = sphi 0, %s22
      %p19 = scmp.ge.s32.totalorder %s18, 4
      %s28 = sphi 0, %s30
      %s31 = sphi 0, %s28
      %s32 = sphi 0, %s31
      %s48 = sphi 0, %s32
      %s52 = sphi 0, %s52
      %s54 = sphi 0, %s52
      %s55 = sphi 0, %s54
      %s69 = sphi 0, %s55
      %s73 = sphi 0, %s73
      %s75 = sphi 0, %s73
      %s76 = sphi 0, %s75
      %s90 = sphi 0, %s76
      %s94 = sphi 0, %s94
      %s96 = sphi 0, %s94
      %s97 = sphi 0, %s96
      %s111 = sphi 0, %s97
      %s115 = sphi 0, %s115
      %s117 = sphi 0, %s115
      %s118 = sphi 0, %s117
      %s132 = sphi 0, %s118
      %s136 = sphi 0, %s136
      %s138 = sphi 0, %s136
      %s139 = sphi 0, %s138
      %s153 = sphi 0, %s139
      %s157 = sphi 0, %s157
      %s159 = sphi 0, %s157
      %s160 = sphi 0, %s159
      %s174 = sphi 0, %s160
      %s178 = sphi 0, %s178
      %s180 = sphi 0, %s178
      %s181 = sphi 0, %s180
      %s195 = sphi 0, %s181
      %s199 = sphi 0, %s199
      %s201 = sphi 0, %s199
      %s202 = sphi 0, %s201
      %s216 = sphi 0, %s202
      %s222 = sphi 0, %s224
      %s225 = sphi 0, %s222
      %s226 = sphi 0, %s225
      %s242 = sphi 0, %s226
    $region4: #{tpu_custom_call.1} parent=1 // loop_header_branch
      %21 = sbr.rel (%p19) target = $region8
    $region5: #{tpu_custom_call.1} parent=1 // loop_body
      %s23 = ssub.s32 %s18, 1
      %s24 = ssub.s32 %s18, 2
      %s25 = sadd.s32 %s18, 1
      %s26 = ssub.s32 %s18, %s25
      %p27 = scmp.eq.s32.totalorder %s26, 0
      %s29 = sadd.s32 %s28, 1
      %s30 = scalar_select %p27, %s28, %s29
      %p33 = pneg %p27
      %p34 = scmp.eq.s32.totalorder %s18, 1
      %p35 = por %p33, %p34
      %p36 = scmp.ne.s32.totalorder %s28, %s31
      %p37 = scmp.eq.s32.totalorder %s18, 0
      %p38 = por %p36, %p37
      %p39 = scmp.ne.s32.totalorder %s28, %s31
      %p40 = scmp.eq.s32.totalorder %s23, 1
      %p41 = por %p39, %p40
      %p42 = scmp.ne.s32.totalorder %s31, %s32
      %p43 = scmp.eq.s32.totalorder %s23, 0
      %p44 = por %p42, %p43
      %p45 = scmp.ne.s32.totalorder %s31, %s32
      %p46 = scmp.eq.s32.totalorder %s24, 1
      %p47 = por %p45, %p46
      %p49 = scmp.ne.s32.totalorder %s32, %s48
      %p50 = scmp.eq.s32.totalorder %s24, 0
      %p51 = por %p49, %p50
      %s53 = sadd.s32 %s52, 1
      %p56 = scmp.eq.s32.totalorder %s18, 1
      %p57 = scmp.ne.s32.totalorder %s52, %s54
      %p58 = scmp.eq.s32.totalorder %s18, 0
      %p59 = por %p57, %p58
      %p60 = scmp.ne.s32.totalorder %s52, %s54
      %p61 = scmp.eq.s32.totalorder %s23, 1
      %p62 = por %p60, %p61
      %p63 = scmp.ne.s32.totalorder %s54, %s55
      %p64 = scmp.eq.s32.totalorder %s23, 0
      %p65 = por %p63, %p64
      %p66 = scmp.ne.s32.totalorder %s54, %s55
      %p67 = scmp.eq.s32.totalorder %s24, 1
      %p68 = por %p66, %p67
      %p70 = scmp.ne.s32.totalorder %s55, %s69
      %p71 = scmp.eq.s32.totalorder %s24, 0
      %p72 = por %p70, %p71
      %s74 = sadd.s32 %s73, 1
      %p77 = scmp.eq.s32.totalorder %s18, 1
      %p78 = scmp.ne.s32.totalorder %s73, %s75
      %p79 = scmp.eq.s32.totalorder %s18, 0
      %p80 = por %p78, %p79
      %p81 = scmp.ne.s32.totalorder %s73, %s75
      %p82 = scmp.eq.s32.totalorder %s23, 1
      %p83 = por %p81, %p82
      %p84 = scmp.ne.s32.totalorder %s75, %s76
      %p85 = scmp.eq.s32.totalorder %s23, 0
      %p86 = por %p84, %p85
      %p87 = scmp.ne.s32.totalorder %s75, %s76
      %p88 = scmp.eq.s32.totalorder %s24, 1
      %p89 = por %p87, %p88
      %p91 = scmp.ne.s32.totalorder %s76, %s90
      %p92 = scmp.eq.s32.totalorder %s24, 0
      %p93 = por %p91, %p92
      %s95 = sadd.s32 %s94, 1
      %p98 = scmp.eq.s32.totalorder %s18, 1
      %p99 = scmp.ne.s32.totalorder %s94, %s96
      %p100 = scmp.eq.s32.totalorder %s18, 0
      %p101 = por %p99, %p100
      %p102 = scmp.ne.s32.totalorder %s94, %s96
      %p103 = scmp.eq.s32.totalorder %s23, 1
      %p104 = por %p102, %p103
      %p105 = scmp.ne.s32.totalorder %s96, %s97
      %p106 = scmp.eq.s32.totalorder %s23, 0
      %p107 = por %p105, %p106
      %p108 = scmp.ne.s32.totalorder %s96, %s97
      %p109 = scmp.eq.s32.totalorder %s24, 1
      %p110 = por %p108, %p109
      %p112 = scmp.ne.s32.totalorder %s97, %s111
      %p113 = scmp.eq.s32.totalorder %s24, 0
      %p114 = por %p112, %p113
      %s116 = sadd.s32 %s115, 1
      %p119 = scmp.eq.s32.totalorder %s18, 1
      %p120 = scmp.ne.s32.totalorder %s115, %s117
      %p121 = scmp.eq.s32.totalorder %s18, 0
      %p122 = por %p120, %p121
      %p123 = scmp.ne.s32.totalorder %s115, %s117
      %p124 = scmp.eq.s32.totalorder %s23, 1
      %p125 = por %p123, %p124
      %p126 = scmp.ne.s32.totalorder %s117, %s118
      %p127 = scmp.eq.s32.totalorder %s23, 0
      %p128 = por %p126, %p127
      %p129 = scmp.ne.s32.totalorder %s117, %s118
      %p130 = scmp.eq.s32.totalorder %s24, 1
      %p131 = por %p129, %p130
      %p133 = scmp.ne.s32.totalorder %s118, %s132
      %p134 = scmp.eq.s32.totalorder %s24, 0
      %p135 = por %p133, %p134
      %s137 = sadd.s32 %s136, 1
      %p140 = scmp.eq.s32.totalorder %s18, 1
      %p141 = scmp.ne.s32.totalorder %s136, %s138
      %p142 = scmp.eq.s32.totalorder %s18, 0
      %p143 = por %p141, %p142
      %p144 = scmp.ne.s32.totalorder %s136, %s138
      %p145 = scmp.eq.s32.totalorder %s23, 1
      %p146 = por %p144, %p145
      %p147 = scmp.ne.s32.totalorder %s138, %s139
      %p148 = scmp.eq.s32.totalorder %s23, 0
      %p149 = por %p147, %p148
      %p150 = scmp.ne.s32.totalorder %s138, %s139
      %p151 = scmp.eq.s32.totalorder %s24, 1
      %p152 = por %p150, %p151
      %p154 = scmp.ne.s32.totalorder %s139, %s153
      %p155 = scmp.eq.s32.totalorder %s24, 0
      %p156 = por %p154, %p155
      %s158 = sadd.s32 %s157, 1
      %p161 = scmp.eq.s32.totalorder %s18, 1
      %p162 = scmp.ne.s32.totalorder %s157, %s159
      %p163 = scmp.eq.s32.totalorder %s18, 0
      %p164 = por %p162, %p163
      %p165 = scmp.ne.s32.totalorder %s157, %s159
      %p166 = scmp.eq.s32.totalorder %s23, 1
      %p167 = por %p165, %p166
      %p168 = scmp.ne.s32.totalorder %s159, %s160
      %p169 = scmp.eq.s32.totalorder %s23, 0
      %p170 = por %p168, %p169
      %p171 = scmp.ne.s32.totalorder %s159, %s160
      %p172 = scmp.eq.s32.totalorder %s24, 1
      %p173 = por %p171, %p172
      %p175 = scmp.ne.s32.totalorder %s160, %s174
      %p176 = scmp.eq.s32.totalorder %s24, 0
      %p177 = por %p175, %p176
      %s179 = sadd.s32 %s178, 1
      %p182 = scmp.eq.s32.totalorder %s18, 1
      %p183 = scmp.ne.s32.totalorder %s178, %s180
      %p184 = scmp.eq.s32.totalorder %s18, 0
      %p185 = por %p183, %p184
      %p186 = scmp.ne.s32.totalorder %s178, %s180
      %p187 = scmp.eq.s32.totalorder %s23, 1
      %p188 = por %p186, %p187
      %p189 = scmp.ne.s32.totalorder %s180, %s181
      %p190 = scmp.eq.s32.totalorder %s23, 0
      %p191 = por %p189, %p190
      %p192 = scmp.ne.s32.totalorder %s180, %s181
      %p193 = scmp.eq.s32.totalorder %s24, 1
      %p194 = por %p192, %p193
      %p196 = scmp.ne.s32.totalorder %s181, %s195
      %p197 = scmp.eq.s32.totalorder %s24, 0
      %p198 = por %p196, %p197
      %s200 = sadd.s32 %s199, 1
      %p203 = scmp.eq.s32.totalorder %s18, 1
      %p204 = scmp.ne.s32.totalorder %s199, %s201
      %p205 = scmp.eq.s32.totalorder %s18, 0
      %p206 = por %p204, %p205
      %p207 = scmp.ne.s32.totalorder %s199, %s201
      %p208 = scmp.eq.s32.totalorder %s23, 1
      %p209 = por %p207, %p208
      %p210 = scmp.ne.s32.totalorder %s201, %s202
      %p211 = scmp.eq.s32.totalorder %s23, 0
      %p212 = por %p210, %p211
      %p213 = scmp.ne.s32.totalorder %s201, %s202
      %p214 = scmp.eq.s32.totalorder %s24, 1
      %p215 = por %p213, %p214
      %p217 = scmp.ne.s32.totalorder %s202, %s216
      %p218 = scmp.eq.s32.totalorder %s24, 0
      %p219 = por %p217, %p218
      %s220 = ssub.s32 %s18, %s25
      %p221 = scmp.eq.s32.totalorder %s220, 0
      %s223 = sadd.s32 %s222, 1
      %s224 = scalar_select %p221, %s222, %s223
      %p227 = pneg %p221
      %p228 = scmp.eq.s32.totalorder %s18, 1
      %p229 = por %p227, %p228
      %p230 = scmp.ne.s32.totalorder %s222, %s225
      %p231 = scmp.eq.s32.totalorder %s18, 0
      %p232 = por %p230, %p231
      %p233 = scmp.ne.s32.totalorder %s222, %s225
      %p234 = scmp.eq.s32.totalorder %s23, 1
      %p235 = por %p233, %p234
      %p236 = scmp.ne.s32.totalorder %s225, %s226
      %p237 = scmp.eq.s32.totalorder %s23, 0
      %p238 = por %p236, %p237
      %p239 = scmp.ne.s32.totalorder %s225, %s226
      %p240 = scmp.eq.s32.totalorder %s24, 1
      %p241 = por %p239, %p240
      %p243 = scmp.ne.s32.totalorder %s226, %s242
      %p244 = scmp.eq.s32.totalorder %s24, 0
      %p245 = por %p243, %p244
      %p246 = scmp.le.s32.totalorder 1, %s18
      %p247 = scmp.lt.s32.totalorder %s18, 3
      %p248 = pnand %p246, %p247
      %p249 = pneg %p248
      // Predicated region
      $region9: #{tpu_custom_call.1} parent=5 // pred_check
        _
      $region10: #{tpu_custom_call.1} parent=5 // pred_check_branch
        %251 = sbr.rel (%p248) target = $region12
      $region11: #{tpu_custom_call.1} parent=5 // pred_region
        %s252 = ssub.s32 %s18, 1
        // Predicated region
        $region13: #{tpu_custom_call.1} parent=11 // pred_check
          %p253 = pneg %p65
        $region14: #{tpu_custom_call.1} parent=11 // pred_check_branch
          %255 = sbr.rel (%p253) target = $region16
        $region15: #{tpu_custom_call.1} parent=11 // pred_region
          _
        $region16: #{tpu_custom_call.1} parent=11 // pred_fallthru
          _
        // Predicated region
        $region17: #{tpu_custom_call.1} parent=11 // pred_check
          %p256 = pneg %p86
        $region18: #{tpu_custom_call.1} parent=11 // pred_check_branch
          %258 = sbr.rel (%p256) target = $region20
        $region19: #{tpu_custom_call.1} parent=11 // pred_region
          _
        $region20: #{tpu_custom_call.1} parent=11 // pred_fallthru
          _
        // Predicated region
        $region21: #{tpu_custom_call.1} parent=11 // pred_check
          %p259 = pneg %p107
        $region22: #{tpu_custom_call.1} parent=11 // pred_check_branch
          %261 = sbr.rel (%p259) target = $region24
        $region23: #{tpu_custom_call.1} parent=11 // pred_region
          _
        $region24: #{tpu_custom_call.1} parent=11 // pred_fallthru
          _
        // Predicated region
        $region25: #{tpu_custom_call.1} parent=11 // pred_check
          %p262 = pneg %p128
        $region26: #{tpu_custom_call.1} parent=11 // pred_check_branch
          %264 = sbr.rel (%p262) target = $region28
        $region27: #{tpu_custom_call.1} parent=11 // pred_region
          _
        $region28: #{tpu_custom_call.1} parent=11 // pred_fallthru
          _
        // Predicated region
        $region29: #{tpu_custom_call.1} parent=11 // pred_check
          %p265 = pneg %p149
        $region30: #{tpu_custom_call.1} parent=11 // pred_check_branch
          %267 = sbr.rel (%p265) target = $region32
        $region31: #{tpu_custom_call.1} parent=11 // pred_region
          _
        $region32: #{tpu_custom_call.1} parent=11 // pred_fallthru
          _
        // Predicated region
        $region33: #{tpu_custom_call.1} parent=11 // pred_check
          %p268 = pneg %p170
        $region34: #{tpu_custom_call.1} parent=11 // pred_check_branch
          %270 = sbr.rel (%p268) target = $region36
        $region35: #{tpu_custom_call.1} parent=11 // pred_region
          _
        $region36: #{tpu_custom_call.1} parent=11 // pred_fallthru
          _
        // Predicated region
        $region37: #{tpu_custom_call.1} parent=11 // pred_check
          %p271 = pneg %p191
        $region38: #{tpu_custom_call.1} parent=11 // pred_check_branch
          %273 = sbr.rel (%p271) target = $region40
        $region39: #{tpu_custom_call.1} parent=11 // pred_region
          _
        $region40: #{tpu_custom_call.1} parent=11 // pred_fallthru
          _
        // Predicated region
        $region41: #{tpu_custom_call.1} parent=11 // pred_check
          %p274 = pneg %p212
        $region42: #{tpu_custom_call.1} parent=11 // pred_check_branch
          %276 = sbr.rel (%p274) target = $region44
        $region43: #{tpu_custom_call.1} parent=11 // pred_region
          _
        $region44: #{tpu_custom_call.1} parent=11 // pred_fallthru
          _
      $region12: #{tpu_custom_call.1} parent=5 // pred_fallthru
        _
      %p277 = scmp.lt.s32.totalorder %s18, 2
      // Predicated region
      $region45: #{tpu_custom_call.1} parent=5 // pred_check
        %p278 = pneg %p277
      $region46: #{tpu_custom_call.1} parent=5 // pred_check_branch
        %280 = sbr.rel (%p278) target = $region48
      $region47: #{tpu_custom_call.1} parent=5 // pred_region
        // Predicated region
        $region49: #{tpu_custom_call.1} parent=47 // pred_check
          %p281 = pneg %p38
        $region50: #{tpu_custom_call.1} parent=47 // pred_check_branch
          %283 = sbr.rel (%p281) target = $region52
        $region51: #{tpu_custom_call.1} parent=47 // pred_region
          %p284 = scmp.lt.s32.totalorder %s18, 1
          %s285 = scalar_select %p284, %s18, 1
          %s286 = smul.addr %s285, 2
          %s287 = smul.addr %s286, 4
          %s288 = scalar_lea.vmem %s0, %s287
        $region52: #{tpu_custom_call.1} parent=47 // pred_fallthru
          _
      $region48: #{tpu_custom_call.1} parent=5 // pred_fallthru
        _
      %p289 = scmp.le.s32.totalorder 1, %s18
      %p290 = scmp.lt.s32.totalorder %s18, 3
      %p291 = pnand %p289, %p290
      %p292 = pneg %p291
      // Predicated region
      $region53: #{tpu_custom_call.1} parent=5 // pred_check
        _
      $region54: #{tpu_custom_call.1} parent=5 // pred_check_branch
        %294 = sbr.rel (%p291) target = $region56
      $region55: #{tpu_custom_call.1} parent=5 // pred_region
        %s295 = ssub.s32 %s18, 1
        %p296 = scmp.lt.s32.totalorder %s23, 1
        %s297 = scalar_select %p296, %s23, 1
        %s298 = smul.addr %s297, 2
        %s299 = smul.addr %s298, 4
        %s300 = scalar_lea.vmem %s0, %s299
        %p301 = pneg %p44
        %p302 = pneg %p41
        %p303 = pneg %p65
        %p304 = pneg %p62
        %p305 = pneg %p86
        %p306 = pneg %p83
        %p307 = pneg %p107
        %p308 = pneg %p104
        %p309 = pneg %p128
        %p310 = pneg %p125
        %p311 = pneg %p149
        %p312 = pneg %p146
        %p313 = pneg %p170
        %p314 = pneg %p167
        %p315 = pneg %p191
        %p316 = pneg %p188
        %p317 = pneg %p212
        %p318 = pneg %p209
        %p319 = pneg %p238
        %p320 = pneg %p235
        %s321 = sand.u32 %s225, 1
        %s322 = scalar_lea.sflag [#allocation3], %s321
        %s323 = sand.u32 %s225, 1
        %s324 = smul.addr %s323, 16
        %s325 = scalar_lea.vmem [#allocation2], %s324
        %p326 = scmp.lt.s32.totalorder %s23, 1
        %s327 = scalar_select %p326, %s23, 1
        %s328 = smul.addr %s327, 2
        %s329 = smul.addr %s328, 4
        %s330 = scalar_lea.vmem %s0, %s329
        %v331 = vld [vmem:[%s330] sm:$0xff]
        %v332 = vld [vmem:[%s2] sm:$0x3]
        %v333 = vld [vmem:[%s3] sm:$0x3]
        %335 = vset.pattern.permute.xlu0 0
        %336 = vperm.xlu0 %335, %v333
        %v337 = vpop.permute.xlu0 %336
        %v340 = vcombine.high %v331, %v331
        %vm341 = vcmask 31744
        %v343 = vsel %vm341, %v332, 0
        %vm345 = vcmask 1043456
        %v346 = vsel %vm345, %v331, 0
        %v348 = vsel %vm345, %v340, 0
        %350 = vmatprep.subr.mxu0 %v348
        %351 = vmatpush1.msra.mxu0 %v346
        %352 = vmatprep.subr.mxu0 0.0
        %353 = vmatpush1.msra.mxu0 0.0
        %354 = vmatprep.subr.mxu0 0.0
        %355 = vmatpush1.msra.mxu0 0.0
        %356 = vmatprep.subr.mxu0 0.0
        %357 = vmatpush1.msra.mxu0 0.0
        %358 = vmatprep.subr.mxu0 0.0
        %359 = vmatpush1.msra.mxu0 0.0
        %360 = vmatprep.subr.mxu0 0.0
        %361 = vmatpush1.msra.mxu0 0.0
        %362 = vmatprep.subr.mxu0 0.0
        %363 = vmatpush1.msra.mxu0 0.0
        %364 = vmatprep.subr.mxu0 0.0
        %365 = vmatpush1.msra.mxu0 0.0
        %366 = vmatprep.subr.mxu0 0.0
        %367 = vmatpush1.msra.mxu0 0.0
        %368 = vmatprep.subr.mxu0 0.0
        %369 = vmatpush1.msra.mxu0 0.0
        %370 = vmatprep.subr.mxu0 0.0
        %371 = vmatpush1.msra.mxu0 0.0
        %372 = vmatprep.subr.mxu0 0.0
        %373 = vmatpush1.msra.mxu0 0.0
        %374 = vmatprep.subr.mxu0 0.0
        %375 = vmatpush1.msra.mxu0 0.0
        %376 = vmatprep.subr.mxu0 0.0
        %377 = vmatpush1.msra.mxu0 0.0
        %378 = vmatprep.subr.mxu0 0.0
        %379 = vmatpush1.msra.mxu0 0.0
        %380 = vmatprep.subr.mxu0 0.0
        %381 = vmatpush1.msra.mxu0 0.0
        %382 = vmatprep.subr.mxu0 0.0
        %383 = vmatpush1.msra.mxu0 0.0
        %384 = vmatprep.subr.mxu0 0.0
        %385 = vmatpush1.msra.mxu0 0.0
        %386 = vmatprep.subr.mxu0 0.0
        %387 = vmatpush1.msra.mxu0 0.0
        %388 = vmatprep.subr.mxu0 0.0
        %389 = vmatpush1.msra.mxu0 0.0
        %390 = vmatprep.subr.mxu0 0.0
        %391 = vmatpush1.msra.mxu0 0.0
        %392 = vmatprep.subr.mxu0 0.0
        %393 = vmatpush1.msra.mxu0 0.0
        %394 = vmatprep.subr.mxu0 0.0
        %395 = vmatpush1.msra.mxu0 0.0
        %396 = vmatprep.subr.mxu0 0.0
        %397 = vmatpush1.msra.mxu0 0.0
        %398 = vmatprep.subr.mxu0 0.0
        %399 = vmatpush1.msra.mxu0 0.0
        %400 = vmatprep.subr.mxu0 0.0
        %401 = vmatpush1.msra.mxu0 0.0
        %402 = vmatprep.subr.mxu0 0.0
        %403 = vmatpush1.msra.mxu0 0.0
        %404 = vmatprep.subr.mxu0 0.0
        %405 = vmatpush1.msra.mxu0 0.0
        %406 = vmatprep.subr.mxu0 0.0
        %407 = vmatpush1.msra.mxu0 0.0
        %408 = vmatprep.subr.mxu0 0.0
        %409 = vmatpush1.msra.mxu0 0.0
        %410 = vmatprep.subr.mxu0 0.0
        %411 = vmatpush1.msra.mxu0 0.0
        %412 = vmatprep.subr.mxu0 0.0
        %413 = vmatpush1.msra.mxu0 0.0
        %414 = vmatprep.mubr.f32.mxu0 0.0
        %415 = vmatmul.mubr.f32.gmra.mrb[0].mxu0 %v343
        %v416 = vpop.f32.mrb[0].mxu0
        %v417 = vadd.f32 %v337, %v416
        %v418 = vpop.f32.mrb[0].mxu0
        %v419 = vadd.f32 %v337, %v418
        %420 = vdwg.mxu0
        %v421 = vxor.u32 %v417, 2147483648
        %v422 = vxor.u32 %v419, 2147483648
        %v423 = vmul.f32 %v421, 1.442695
        %v424 = vpow.pop %v423
        %v425 = vmul.f32 %v422, 1.442695
        %v426 = vpow.pop %v425
        %v427 = vadd.f32 %v424, 1.0
        %v428 = vadd.f32 %v426, 1.0
        %v429 = vrcp.pop %v427
        %v430 = vmul.f32 1.0, %v429
        %v431 = vrcp.pop %v428
        %v432 = vmul.f32 1.0, %v431
        %v433 = vmul.f32 %v417, %v430
        %v434 = vmul.f32 %v419, %v432
        %v435 = vld [vmem:[%s1] sm:$0xff]
        %v436 = vld [vmem:[%s1 + $0x8] sm:$0xff]
        %v437 = vld [vmem:[%s4] sm:$0xff]
        %438 = vrot.lane.b32.xlu0 %v433, 2
        %v439 = vpop.permute.xlu0 %438
        %440 = vrot.lane.b32.xlu0 %v434, 2
        %v441 = vpop.permute.xlu0 %440
        %v442 = vlaneseq
        %v443 = vand.u32 %v442, 127
        %vm444 = vcmp.lt.s32.totalorder %v443, 2
        %v445 = vsel %vm444, %v439, %v441
        %v446 = vsel %vm444, %v441, %v439
        %v447 = vlaneseq
        %v448 = vshrl.u32 %v447, 7
        %v449 = vsub.s32 0, %v448
        %v450 = vrot.slane %v435, %v449
        %v451 = vlaneseq
        %v452 = vshrl.u32 %v451, 7
        %v453 = vsub.s32 0, %v452
        %v454 = vrot.slane %v436, %v453
        %v455 = vadd.f32 %v446, %v450
        %v456 = vadd.f32 %v445, %v454
        %v457 = vmax.f32 %v433, %v455
        %v458 = vmax.f32 %v434, %v456
        %459 = vrot.lane.b32.xlu0 %v433, 1
        %v460 = vpop.permute.xlu0 %459
        %461 = vrot.lane.b32.xlu0 %v434, 1
        %v462 = vpop.permute.xlu0 %461
        %vm463 = vcmp.lt.s32.totalorder %v443, 1
        %v464 = vsel %vm463, %v460, %v462
        %v465 = vsel %vm463, %v462, %v460
        %v466 = vlaneseq
        %v467 = vshrl.u32 %v466, 7
        %v468 = vsub.s32 1, %v467
        %v469 = vrot.slane %v435, %v468
        %v470 = vlaneseq
        %v471 = vshrl.u32 %v470, 7
        %v472 = vsub.s32 1, %v471
        %v473 = vrot.slane %v436, %v472
        %v474 = vadd.f32 %v465, %v469
        %v475 = vadd.f32 %v464, %v473
        %v476 = vmax.f32 %v457, %v474
        %v477 = vmax.f32 %v458, %v475
        %478 = vrot.lane.b32.xlu0 %v433, 127
        %v479 = vpop.permute.xlu0 %478
        %480 = vrot.lane.b32.xlu0 %v434, 127
        %v481 = vpop.permute.xlu0 %480
        %vm482 = vcmp.lt.s32.totalorder %v443, 127
        %v483 = vsel %vm482, %v479, %v481
        %v484 = vsel %vm482, %v481, %v479
        %v485 = vlaneseq
        %v486 = vshrl.u32 %v485, 7
        %v487 = vsub.s32 2, %v486
        %v488 = vrot.slane %v435, %v487
        %v489 = vlaneseq
        %v490 = vshrl.u32 %v489, 7
        %v491 = vsub.s32 2, %v490
        %v492 = vrot.slane %v436, %v491
        %v493 = vadd.f32 %v483, %v488
        %v494 = vadd.f32 %v484, %v492
        %v495 = vmax.f32 %v476, %v493
        %v496 = vmax.f32 %v477, %v494
        %497 = vrot.lane.b32.xlu0 %v433, 126
        %v498 = vpop.permute.xlu0 %497
        %499 = vrot.lane.b32.xlu0 %v434, 126
        %v500 = vpop.permute.xlu0 %499
        %vm501 = vcmp.lt.s32.totalorder %v443, 126
        %v502 = vsel %vm501, %v498, %v500
        %v503 = vsel %vm501, %v500, %v498
        %v504 = vlaneseq
        %v505 = vshrl.u32 %v504, 7
        %v506 = vsub.s32 3, %v505
        %v507 = vrot.slane %v435, %v506
        %v508 = vlaneseq
        %v509 = vshrl.u32 %v508, 7
        %v510 = vsub.s32 3, %v509
        %v511 = vrot.slane %v436, %v510
        %v512 = vadd.f32 %v502, %v507
        %v513 = vadd.f32 %v503, %v511
        %v514 = vmax.f32 %v495, %v512
        %v515 = vmax.f32 %v496, %v513
        %516 = vrot.lane.b32.xlu0 %v514, 32
        %v517 = vpop.permute.xlu0 %516
        %518 = vrot.lane.b32.xlu0 %v515, 32
        %v519 = vpop.permute.xlu0 %518
        %vm520 = vcmp.lt.s32.totalorder %v443, 32
        %v521 = vsel %vm520, %v517, %v519
        %v522 = vsel %vm520, %v519, %v517
        %v523 = vlaneseq
        %v524 = vshrl.u32 %v523, 7
        %v525 = vsub.s32 4, %v524
        %v526 = vrot.slane %v435, %v525
        %v527 = vlaneseq
        %v528 = vshrl.u32 %v527, 7
        %v529 = vsub.s32 4, %v528
        %v530 = vrot.slane %v436, %v529
        %v531 = vadd.f32 %v522, %v526
        %v532 = vadd.f32 %v521, %v530
        %v533 = vmax.f32 %v514, %v531
        %v534 = vmax.f32 %v515, %v532
        %535 = vrot.lane.b32.xlu0 %v514, 16
        %v536 = vpop.permute.xlu0 %535
        %537 = vrot.lane.b32.xlu0 %v515, 16
        %v538 = vpop.permute.xlu0 %537
        %vm539 = vcmp.lt.s32.totalorder %v443, 16
        %v540 = vsel %vm539, %v536, %v538
        %v541 = vsel %vm539, %v538, %v536
        %v542 = vlaneseq
        %v543 = vshrl.u32 %v542, 7
        %v544 = vsub.s32 5, %v543
        %v545 = vrot.slane %v435, %v544
        %v546 = vlaneseq
        %v547 = vshrl.u32 %v546, 7
        %v548 = vsub.s32 5, %v547
        %v549 = vrot.slane %v436, %v548
        %v550 = vadd.f32 %v541, %v545
        %v551 = vadd.f32 %v540, %v549
        %v552 = vmax.f32 %v533, %v550
        %v553 = vmax.f32 %v534, %v551
        %554 = vrot.lane.b32.xlu0 %v514, 112
        %v555 = vpop.permute.xlu0 %554
        %556 = vrot.lane.b32.xlu0 %v515, 112
        %v557 = vpop.permute.xlu0 %556
        %vm558 = vcmp.lt.s32.totalorder %v443, 112
        %v559 = vsel %vm558, %v555, %v557
        %v560 = vsel %vm558, %v557, %v555
        %v561 = vlaneseq
        %v562 = vshrl.u32 %v561, 7
        %v563 = vsub.s32 6, %v562
        %v564 = vrot.slane %v435, %v563
        %v565 = vlaneseq
        %v566 = vshrl.u32 %v565, 7
        %v567 = vsub.s32 6, %v566
        %v568 = vrot.slane %v436, %v567
        %v569 = vadd.f32 %v559, %v564
        %v570 = vadd.f32 %v560, %v568
        %v571 = vmax.f32 %v552, %v569
        %v572 = vmax.f32 %v553, %v570
        %573 = vrot.lane.b32.xlu0 %v514, 96
        %v574 = vpop.permute.xlu0 %573
        %575 = vrot.lane.b32.xlu0 %v515, 96
        %v576 = vpop.permute.xlu0 %575
        %vm577 = vcmp.lt.s32.totalorder %v443, 96
        %v578 = vsel %vm577, %v574, %v576
        %v579 = vsel %vm577, %v576, %v574
        %v580 = vlaneseq
        %v581 = vshrl.u32 %v580, 7
        %v582 = vsub.s32 7, %v581
        %v583 = vrot.slane %v435, %v582
        %v584 = vlaneseq
        %v585 = vshrl.u32 %v584, 7
        %v586 = vsub.s32 7, %v585
        %v587 = vrot.slane %v436, %v586
        %v588 = vadd.f32 %v578, %v583
        %v589 = vadd.f32 %v579, %v587
        %v590 = vmax.f32 %v571, %v588
        %v591 = vmax.f32 %v572, %v589
        %v592 = vld [vmem:[%s5] sm:$0xff]
        %vm593 = vcmask 15360
        %v595 = vsel %vm593, %v592, 0
        %vm597 = vcmask 1041408
        %v599 = vsel %vm597, %v590, 0
        %v602 = vsel %vm597, %v591, 0
        %604 = vmatprep.subr.mxu0 %v602
        %605 = vmatpush1.msra.mxu0 %v599
        %606 = vmatprep.subr.mxu0 0.0
        %607 = vmatpush1.msra.mxu0 0.0
        %608 = vmatprep.subr.mxu0 0.0
        %609 = vmatpush1.msra.mxu0 0.0
        %610 = vmatprep.subr.mxu0 0.0
        %611 = vmatpush1.msra.mxu0 0.0
        %612 = vmatprep.subr.mxu0 0.0
        %613 = vmatpush1.msra.mxu0 0.0
        %614 = vmatprep.subr.mxu0 0.0
        %615 = vmatpush1.msra.mxu0 0.0
        %616 = vmatprep.subr.mxu0 0.0
        %617 = vmatpush1.msra.mxu0 0.0
        %618 = vmatprep.subr.mxu0 0.0
        %619 = vmatpush1.msra.mxu0 0.0
        %620 = vmatprep.subr.mxu0 0.0
        %621 = vmatpush1.msra.mxu0 0.0
        %622 = vmatprep.subr.mxu0 0.0
        %623 = vmatpush1.msra.mxu0 0.0
        %624 = vmatprep.subr.mxu0 0.0
        %625 = vmatpush1.msra.mxu0 0.0
        %626 = vmatprep.subr.mxu0 0.0
        %627 = vmatpush1.msra.mxu0 0.0
        %628 = vmatprep.subr.mxu0 0.0
        %629 = vmatpush1.msra.mxu0 0.0
        %630 = vmatprep.subr.mxu0 0.0
        %631 = vmatpush1.msra.mxu0 0.0
        %632 = vmatprep.subr.mxu0 0.0
        %633 = vmatpush1.msra.mxu0 0.0
        %634 = vmatprep.subr.mxu0 0.0
        %635 = vmatpush1.msra.mxu0 0.0
        %636 = vmatprep.subr.mxu0 0.0
        %637 = vmatpush1.msra.mxu0 0.0
        %638 = vmatprep.subr.mxu0 0.0
        %639 = vmatpush1.msra.mxu0 0.0
        %640 = vmatprep.subr.mxu0 0.0
        %641 = vmatpush1.msra.mxu0 0.0
        %642 = vmatprep.subr.mxu0 0.0
        %643 = vmatpush1.msra.mxu0 0.0
        %644 = vmatprep.subr.mxu0 0.0
        %645 = vmatpush1.msra.mxu0 0.0
        %646 = vmatprep.subr.mxu0 0.0
        %647 = vmatpush1.msra.mxu0 0.0
        %648 = vmatprep.subr.mxu0 0.0
        %649 = vmatpush1.msra.mxu0 0.0
        %650 = vmatprep.subr.mxu0 0.0
        %651 = vmatpush1.msra.mxu0 0.0
        %652 = vmatprep.subr.mxu0 0.0
        %653 = vmatpush1.msra.mxu0 0.0
        %654 = vmatprep.subr.mxu0 0.0
        %655 = vmatpush1.msra.mxu0 0.0
        %656 = vmatprep.subr.mxu0 0.0
        %657 = vmatpush1.msra.mxu0 0.0
        %658 = vmatprep.subr.mxu0 0.0
        %659 = vmatpush1.msra.mxu0 0.0
        %660 = vmatprep.subr.mxu0 0.0
        %661 = vmatpush1.msra.mxu0 0.0
        %662 = vmatprep.subr.mxu0 0.0
        %663 = vmatpush1.msra.mxu0 0.0
        %664 = vmatprep.subr.mxu0 0.0
        %665 = vmatpush1.msra.mxu0 0.0
        %666 = vmatprep.subr.mxu0 0.0
        %667 = vmatpush1.msra.mxu0 0.0
        %668 = vmatprep.mubr.f32.mxu0 0.0
        %669 = vmatmul.mubr.f32.gmra.mrb[0].mxu0 %v595
        %v670 = vpop.f32.mrb[0].mxu0
        %v671 = vadd.f32 0.0, %v670
        %v672 = vpop.f32.mrb[0].mxu0
        %v673 = vadd.f32 0.0, %v672
        %674 = vdwg.mxu0
        %v676 = vsel %vm593, %v437, 0
        %v679 = vsel %vm597, %v433, 0
        %v682 = vsel %vm597, %v434, 0
        %684 = vmatprep.subr.mxu0 %v682
        %685 = vmatpush1.msra.mxu0 %v679
        %686 = vmatprep.subr.mxu0 0.0
        %687 = vmatpush1.msra.mxu0 0.0
        %688 = vmatprep.subr.mxu0 0.0
        %689 = vmatpush1.msra.mxu0 0.0
        %690 = vmatprep.subr.mxu0 0.0
        %691 = vmatpush1.msra.mxu0 0.0
        %692 = vmatprep.subr.mxu0 0.0
        %693 = vmatpush1.msra.mxu0 0.0
        %694 = vmatprep.subr.mxu0 0.0
        %695 = vmatpush1.msra.mxu0 0.0
        %696 = vmatprep.subr.mxu0 0.0
        %697 = vmatpush1.msra.mxu0 0.0
        %698 = vmatprep.subr.mxu0 0.0
        %699 = vmatpush1.msra.mxu0 0.0
        %700 = vmatprep.subr.mxu0 0.0
        %701 = vmatpush1.msra.mxu0 0.0
        %702 = vmatprep.subr.mxu0 0.0
        %703 = vmatpush1.msra.mxu0 0.0
        %704 = vmatprep.subr.mxu0 0.0
        %705 = vmatpush1.msra.mxu0 0.0
        %706 = vmatprep.subr.mxu0 0.0
        %707 = vmatpush1.msra.mxu0 0.0
        %708 = vmatprep.subr.mxu0 0.0
        %709 = vmatpush1.msra.mxu0 0.0
        %710 = vmatprep.subr.mxu0 0.0
        %711 = vmatpush1.msra.mxu0 0.0
        %712 = vmatprep.subr.mxu0 0.0
        %713 = vmatpush1.msra.mxu0 0.0
        %714 = vmatprep.subr.mxu0 0.0
        %715 = vmatpush1.msra.mxu0 0.0
        %716 = vmatprep.subr.mxu0 0.0
        %717 = vmatpush1.msra.mxu0 0.0
        %718 = vmatprep.subr.mxu0 0.0
        %719 = vmatpush1.msra.mxu0 0.0
        %720 = vmatprep.subr.mxu0 0.0
        %721 = vmatpush1.msra.mxu0 0.0
        %722 = vmatprep.subr.mxu0 0.0
        %723 = vmatpush1.msra.mxu0 0.0
        %724 = vmatprep.subr.mxu0 0.0
        %725 = vmatpush1.msra.mxu0 0.0
        %726 = vmatprep.subr.mxu0 0.0
        %727 = vmatpush1.msra.mxu0 0.0
        %728 = vmatprep.subr.mxu0 0.0
        %729 = vmatpush1.msra.mxu0 0.0
        %730 = vmatprep.subr.mxu0 0.0
        %731 = vmatpush1.msra.mxu0 0.0
        %732 = vmatprep.subr.mxu0 0.0
        %733 = vmatpush1.msra.mxu0 0.0
        %734 = vmatprep.subr.mxu0 0.0
        %735 = vmatpush1.msra.mxu0 0.0
        %736 = vmatprep.subr.mxu0 0.0
        %737 = vmatpush1.msra.mxu0 0.0
        %738 = vmatprep.subr.mxu0 0.0
        %739 = vmatpush1.msra.mxu0 0.0
        %740 = vmatprep.subr.mxu0 0.0
        %741 = vmatpush1.msra.mxu0 0.0
        %742 = vmatprep.subr.mxu0 0.0
        %743 = vmatpush1.msra.mxu0 0.0
        %744 = vmatprep.subr.mxu0 0.0
        %745 = vmatpush1.msra.mxu0 0.0
        %746 = vmatprep.subr.mxu0 0.0
        %747 = vmatpush1.msra.mxu0 0.0
        %748 = vmatprep.mubr.f32.mxu0 0.0
        %749 = vmatmul.mubr.f32.gmra.mrb[0].mxu0 %v676
        %v750 = vpop.f32.mrb[0].mxu0
        %v751 = vadd.f32 %v671, %v750
        %v752 = vpop.f32.mrb[0].mxu0
        %v753 = vadd.f32 %v673, %v752
        %754 = vdwg.mxu0
        %755 = vrot.lane.b32.xlu0 %v590, 2
        %v756 = vpop.permute.xlu0 %755
        %757 = vrot.lane.b32.xlu0 %v591, 2
        %v758 = vpop.permute.xlu0 %757
        %v759 = vsel %vm444, %v756, %v758
        %v760 = vsel %vm444, %v758, %v756
        %v761 = vadd.f32 %v760, %v450
        %v762 = vadd.f32 %v759, %v454
        %v763 = vmax.f32 %v590, %v761
        %v764 = vmax.f32 %v591, %v762
        %765 = vrot.lane.b32.xlu0 %v590, 1
        %v766 = vpop.permute.xlu0 %765
        %767 = vrot.lane.b32.xlu0 %v591, 1
        %v768 = vpop.permute.xlu0 %767
        %v769 = vsel %vm463, %v766, %v768
        %v770 = vsel %vm463, %v768, %v766
        %v771 = vadd.f32 %v770, %v469
        %v772 = vadd.f32 %v769, %v473
        %v773 = vmax.f32 %v763, %v771
        %v774 = vmax.f32 %v764, %v772
        %775 = vrot.lane.b32.xlu0 %v590, 127
        %v776 = vpop.permute.xlu0 %775
        %777 = vrot.lane.b32.xlu0 %v591, 127
        %v778 = vpop.permute.xlu0 %777
        %v779 = vsel %vm482, %v776, %v778
        %v780 = vsel %vm482, %v778, %v776
        %v781 = vadd.f32 %v779, %v488
        %v782 = vadd.f32 %v780, %v492
        %v783 = vmax.f32 %v773, %v781
        %v784 = vmax.f32 %v774, %v782
        %785 = vrot.lane.b32.xlu0 %v590, 126
        %v786 = vpop.permute.xlu0 %785
        %787 = vrot.lane.b32.xlu0 %v591, 126
        %v788 = vpop.permute.xlu0 %787
        %v789 = vsel %vm501, %v786, %v788
        %v790 = vsel %vm501, %v788, %v786
        %v791 = vadd.f32 %v789, %v507
        %v792 = vadd.f32 %v790, %v511
        %v793 = vmax.f32 %v783, %v791
        %v794 = vmax.f32 %v784, %v792
        %795 = vrot.lane.b32.xlu0 %v793, 32
        %v796 = vpop.permute.xlu0 %795
        %797 = vrot.lane.b32.xlu0 %v794, 32
        %v798 = vpop.permute.xlu0 %797
        %v799 = vsel %vm520, %v796, %v798
        %v800 = vsel %vm520, %v798, %v796
        %v801 = vadd.f32 %v800, %v526
        %v802 = vadd.f32 %v799, %v530
        %v803 = vmax.f32 %v793, %v801
        %v804 = vmax.f32 %v794, %v802
        %805 = vrot.lane.b32.xlu0 %v793, 16
        %v806 = vpop.permute.xlu0 %805
        %807 = vrot.lane.b32.xlu0 %v794, 16
        %v808 = vpop.permute.xlu0 %807
        %v809 = vsel %vm539, %v806, %v808
        %v810 = vsel %vm539, %v808, %v806
        %v811 = vadd.f32 %v810, %v545
        %v812 = vadd.f32 %v809, %v549
        %v813 = vmax.f32 %v803, %v811
        %v814 = vmax.f32 %v804, %v812
        %815 = vrot.lane.b32.xlu0 %v793, 112
        %v816 = vpop.permute.xlu0 %815
        %817 = vrot.lane.b32.xlu0 %v794, 112
        %v818 = vpop.permute.xlu0 %817
        %v819 = vsel %vm558, %v816, %v818
        %v820 = vsel %vm558, %v818, %v816
        %v821 = vadd.f32 %v819, %v564
        %v822 = vadd.f32 %v820, %v568
        %v823 = vmax.f32 %v813, %v821
        %v824 = vmax.f32 %v814, %v822
        %825 = vrot.lane.b32.xlu0 %v793, 96
        %v826 = vpop.permute.xlu0 %825
        %827 = vrot.lane.b32.xlu0 %v794, 96
        %v828 = vpop.permute.xlu0 %827
        %v829 = vsel %vm577, %v826, %v828
        %v830 = vsel %vm577, %v828, %v826
        %v831 = vadd.f32 %v829, %v583
        %v832 = vadd.f32 %v830, %v587
        %v833 = vmax.f32 %v823, %v831
        %v834 = vmax.f32 %v824, %v832
        %v835 = vld [vmem:[%s6] sm:$0xff]
        %v837 = vsel %vm593, %v835, 0
        %v840 = vsel %vm597, %v833, 0
        %v843 = vsel %vm597, %v834, 0
        %845 = vmatprep.subr.mxu0 %v843
        %846 = vmatpush1.msra.mxu0 %v840
        %847 = vmatprep.subr.mxu0 0.0
        %848 = vmatpush1.msra.mxu0 0.0
        %849 = vmatprep.subr.mxu0 0.0
        %850 = vmatpush1.msra.mxu0 0.0
        %851 = vmatprep.subr.mxu0 0.0
        %852 = vmatpush1.msra.mxu0 0.0
        %853 = vmatprep.subr.mxu0 0.0
        %854 = vmatpush1.msra.mxu0 0.0
        %855 = vmatprep.subr.mxu0 0.0
        %856 = vmatpush1.msra.mxu0 0.0
        %857 = vmatprep.subr.mxu0 0.0
        %858 = vmatpush1.msra.mxu0 0.0
        %859 = vmatprep.subr.mxu0 0.0
        %860 = vmatpush1.msra.mxu0 0.0
        %861 = vmatprep.subr.mxu0 0.0
        %862 = vmatpush1.msra.mxu0 0.0
        %863 = vmatprep.subr.mxu0 0.0
        %864 = vmatpush1.msra.mxu0 0.0
        %865 = vmatprep.subr.mxu0 0.0
        %866 = vmatpush1.msra.mxu0 0.0
        %867 = vmatprep.subr.mxu0 0.0
        %868 = vmatpush1.msra.mxu0 0.0
        %869 = vmatprep.subr.mxu0 0.0
        %870 = vmatpush1.msra.mxu0 0.0
        %871 = vmatprep.subr.mxu0 0.0
        %872 = vmatpush1.msra.mxu0 0.0
        %873 = vmatprep.subr.mxu0 0.0
        %874 = vmatpush1.msra.mxu0 0.0
        %875 = vmatprep.subr.mxu0 0.0
        %876 = vmatpush1.msra.mxu0 0.0
        %877 = vmatprep.subr.mxu0 0.0
        %878 = vmatpush1.msra.mxu0 0.0
        %879 = vmatprep.subr.mxu0 0.0
        %880 = vmatpush1.msra.mxu0 0.0
        %881 = vmatprep.subr.mxu0 0.0
        %882 = vmatpush1.msra.mxu0 0.0
        %883 = vmatprep.subr.mxu0 0.0
        %884 = vmatpush1.msra.mxu0 0.0
        %885 = vmatprep.subr.mxu0 0.0
        %886 = vmatpush1.msra.mxu0 0.0
        %887 = vmatprep.subr.mxu0 0.0
        %888 = vmatpush1.msra.mxu0 0.0
        %889 = vmatprep.subr.mxu0 0.0
        %890 = vmatpush1.msra.mxu0 0.0
        %891 = vmatprep.subr.mxu0 0.0
        %892 = vmatpush1.msra.mxu0 0.0
        %893 = vmatprep.subr.mxu0 0.0
        %894 = vmatpush1.msra.mxu0 0.0
        %895 = vmatprep.subr.mxu0 0.0
        %896 = vmatpush1.msra.mxu0 0.0
        %897 = vmatprep.subr.mxu0 0.0
        %898 = vmatpush1.msra.mxu0 0.0
        %899 = vmatprep.subr.mxu0 0.0
        %900 = vmatpush1.msra.mxu0 0.0
        %901 = vmatprep.subr.mxu0 0.0
        %902 = vmatpush1.msra.mxu0 0.0
        %903 = vmatprep.subr.mxu0 0.0
        %904 = vmatpush1.msra.mxu0 0.0
        %905 = vmatprep.subr.mxu0 0.0
        %906 = vmatpush1.msra.mxu0 0.0
        %907 = vmatprep.subr.mxu0 0.0
        %908 = vmatpush1.msra.mxu0 0.0
        %909 = vmatprep.mubr.f32.mxu0 0.0
        %910 = vmatmul.mubr.f32.gmra.mrb[0].mxu0 %v837
        %v911 = vpop.f32.mrb[0].mxu0
        %v912 = vadd.f32 0.0, %v911
        %v913 = vpop.f32.mrb[0].mxu0
        %v914 = vadd.f32 0.0, %v913
        %915 = vdwg.mxu0
        %v916 = vadd.f32 %v751, %v912
        %v917 = vadd.f32 %v753, %v914
        %918 = vrot.lane.b32.xlu0 %v833, 2
        %v919 = vpop.permute.xlu0 %918
        %920 = vrot.lane.b32.xlu0 %v834, 2
        %v921 = vpop.permute.xlu0 %920
        %v922 = vsel %vm444, %v919, %v921
        %v923 = vsel %vm444, %v921, %v919
        %v924 = vadd.f32 %v923, %v450
        %v925 = vadd.f32 %v922, %v454
        %v926 = vmax.f32 %v833, %v924
        %v927 = vmax.f32 %v834, %v925
        %928 = vrot.lane.b32.xlu0 %v833, 1
        %v929 = vpop.permute.xlu0 %928
        %930 = vrot.lane.b32.xlu0 %v834, 1
        %v931 = vpop.permute.xlu0 %930
        %v932 = vsel %vm463, %v929, %v931
        %v933 = vsel %vm463, %v931, %v929
        %v934 = vadd.f32 %v933, %v469
        %v935 = vadd.f32 %v932, %v473
        %v936 = vmax.f32 %v926, %v934
        %v937 = vmax.f32 %v927, %v935
        %938 = vrot.lane.b32.xlu0 %v833, 127
        %v939 = vpop.permute.xlu0 %938
        %940 = vrot.lane.b32.xlu0 %v834, 127
        %v941 = vpop.permute.xlu0 %940
        %v942 = vsel %vm482, %v939, %v941
        %v943 = vsel %vm482, %v941, %v939
        %v944 = vadd.f32 %v942, %v488
        %v945 = vadd.f32 %v943, %v492
        %v946 = vmax.f32 %v936, %v944
        %v947 = vmax.f32 %v937, %v945
        %948 = vrot.lane.b32.xlu0 %v833, 126
        %v949 = vpop.permute.xlu0 %948
        %950 = vrot.lane.b32.xlu0 %v834, 126
        %v951 = vpop.permute.xlu0 %950
        %v952 = vsel %vm501, %v949, %v951
        %v953 = vsel %vm501, %v951, %v949
        %v954 = vadd.f32 %v952, %v507
        %v955 = vadd.f32 %v953, %v511
        %v956 = vmax.f32 %v946, %v954
        %v957 = vmax.f32 %v947, %v955
        %958 = vrot.lane.b32.xlu0 %v956, 32
        %v959 = vpop.permute.xlu0 %958
        %960 = vrot.lane.b32.xlu0 %v957, 32
        %v961 = vpop.permute.xlu0 %960
        %v962 = vsel %vm520, %v959, %v961
        %v963 = vsel %vm520, %v961, %v959
        %v964 = vadd.f32 %v963, %v526
        %v965 = vadd.f32 %v962, %v530
        %v966 = vmax.f32 %v956, %v964
        %v967 = vmax.f32 %v957, %v965
        %968 = vrot.lane.b32.xlu0 %v956, 16
        %v969 = vpop.permute.xlu0 %968
        %970 = vrot.lane.b32.xlu0 %v957, 16
        %v971 = vpop.permute.xlu0 %970
        %v972 = vsel %vm539, %v969, %v971
        %v973 = vsel %vm539, %v971, %v969
        %v974 = vadd.f32 %v973, %v545
        %v975 = vadd.f32 %v972, %v549
        %v976 = vmax.f32 %v966, %v974
        %v977 = vmax.f32 %v967, %v975
        %978 = vrot.lane.b32.xlu0 %v956, 112
        %v979 = vpop.permute.xlu0 %978
        %980 = vrot.lane.b32.xlu0 %v957, 112
        %v981 = vpop.permute.xlu0 %980
        %v982 = vsel %vm558, %v979, %v981
        %v983 = vsel %vm558, %v981, %v979
        %v984 = vadd.f32 %v982, %v564
        %v985 = vadd.f32 %v983, %v568
        %v986 = vmax.f32 %v976, %v984
        %v987 = vmax.f32 %v977, %v985
        %988 = vrot.lane.b32.xlu0 %v956, 96
        %v989 = vpop.permute.xlu0 %988
        %990 = vrot.lane.b32.xlu0 %v957, 96
        %v991 = vpop.permute.xlu0 %990
        %v992 = vsel %vm577, %v989, %v991
        %v993 = vsel %vm577, %v991, %v989
        %v994 = vadd.f32 %v992, %v583
        %v995 = vadd.f32 %v993, %v587
        %v996 = vmax.f32 %v986, %v994
        %v997 = vmax.f32 %v987, %v995
        %v998 = vld [vmem:[%s7] sm:$0xff]
        %v1000 = vsel %vm593, %v998, 0
        %v1003 = vsel %vm597, %v996, 0
        %v1006 = vsel %vm597, %v997, 0
        %1008 = vmatprep.subr.mxu0 %v1006
        %1009 = vmatpush1.msra.mxu0 %v1003
        %1010 = vmatprep.subr.mxu0 0.0
        %1011 = vmatpush1.msra.mxu0 0.0
        %1012 = vmatprep.subr.mxu0 0.0
        %1013 = vmatpush1.msra.mxu0 0.0
        %1014 = vmatprep.subr.mxu0 0.0
        %1015 = vmatpush1.msra.mxu0 0.0
        %1016 = vmatprep.subr.mxu0 0.0
        %1017 = vmatpush1.msra.mxu0 0.0
        %1018 = vmatprep.subr.mxu0 0.0
        %1019 = vmatpush1.msra.mxu0 0.0
        %1020 = vmatprep.subr.mxu0 0.0
        %1021 = vmatpush1.msra.mxu0 0.0
        %1022 = vmatprep.subr.mxu0 0.0
        %1023 = vmatpush1.msra.mxu0 0.0
        %1024 = vmatprep.subr.mxu0 0.0
        %1025 = vmatpush1.msra.mxu0 0.0
        %1026 = vmatprep.subr.mxu0 0.0
        %1027 = vmatpush1.msra.mxu0 0.0
        %1028 = vmatprep.subr.mxu0 0.0
        %1029 = vmatpush1.msra.mxu0 0.0
        %1030 = vmatprep.subr.mxu0 0.0
        %1031 = vmatpush1.msra.mxu0 0.0
        %1032 = vmatprep.subr.mxu0 0.0
        %1033 = vmatpush1.msra.mxu0 0.0
        %1034 = vmatprep.subr.mxu0 0.0
        %1035 = vmatpush1.msra.mxu0 0.0
        %1036 = vmatprep.subr.mxu0 0.0
        %1037 = vmatpush1.msra.mxu0 0.0
        %1038 = vmatprep.subr.mxu0 0.0
        %1039 = vmatpush1.msra.mxu0 0.0
        %1040 = vmatprep.subr.mxu0 0.0
        %1041 = vmatpush1.msra.mxu0 0.0
        %1042 = vmatprep.subr.mxu0 0.0
        %1043 = vmatpush1.msra.mxu0 0.0
        %1044 = vmatprep.subr.mxu0 0.0
        %1045 = vmatpush1.msra.mxu0 0.0
        %1046 = vmatprep.subr.mxu0 0.0
        %1047 = vmatpush1.msra.mxu0 0.0
        %1048 = vmatprep.subr.mxu0 0.0
        %1049 = vmatpush1.msra.mxu0 0.0
        %1050 = vmatprep.subr.mxu0 0.0
        %1051 = vmatpush1.msra.mxu0 0.0
        %1052 = vmatprep.subr.mxu0 0.0
        %1053 = vmatpush1.msra.mxu0 0.0
        %1054 = vmatprep.subr.mxu0 0.0
        %1055 = vmatpush1.msra.mxu0 0.0
        %1056 = vmatprep.subr.mxu0 0.0
        %1057 = vmatpush1.msra.mxu0 0.0
        %1058 = vmatprep.subr.mxu0 0.0
        %1059 = vmatpush1.msra.mxu0 0.0
        %1060 = vmatprep.subr.mxu0 0.0
        %1061 = vmatpush1.msra.mxu0 0.0
        %1062 = vmatprep.subr.mxu0 0.0
        %1063 = vmatpush1.msra.mxu0 0.0
        %1064 = vmatprep.subr.mxu0 0.0
        %1065 = vmatpush1.msra.mxu0 0.0
        %1066 = vmatprep.subr.mxu0 0.0
        %1067 = vmatpush1.msra.mxu0 0.0
        %1068 = vmatprep.subr.mxu0 0.0
        %1069 = vmatpush1.msra.mxu0 0.0
        %1070 = vmatprep.subr.mxu0 0.0
        %1071 = vmatpush1.msra.mxu0 0.0
        %1072 = vmatprep.mubr.f32.mxu0 0.0
        %1073 = vmatmul.mubr.f32.gmra.mrb[0].mxu0 %v1000
        %v1074 = vpop.f32.mrb[0].mxu0
        %v1075 = vadd.f32 0.0, %v1074
        %v1076 = vpop.f32.mrb[0].mxu0
        %v1077 = vadd.f32 0.0, %v1076
        %1078 = vdwg.mxu0
        %v1079 = vadd.f32 %v916, %v1075
        %v1080 = vadd.f32 %v917, %v1077
        %v1081 = vld [vmem:[%s8] sm:$0xff]
        %1083 = vset.pattern.permute.xlu0 0
        %1084 = vperm.xlu0 %1083, %v1081
        %v1085 = vpop.permute.xlu0 %1084
        %v1087 = vadd.f32 %v1079, %v1085
        %v1088 = vadd.f32 %v1080, %v1085
        %v1089 = vxor.u32 %v1087, 2147483648
        %v1090 = vxor.u32 %v1088, 2147483648
        %v1091 = vmul.f32 %v1089, 1.442695
        %v1092 = vpow.pop %v1091
        %v1093 = vmul.f32 %v1090, 1.442695
        %v1094 = vpow.pop %v1093
        %v1095 = vadd.f32 %v1092, 1.0
        %v1096 = vadd.f32 %v1094, 1.0
        %v1097 = vrcp.pop %v1095
        %v1098 = vmul.f32 1.0, %v1097
        %v1099 = vrcp.pop %v1096
        %v1100 = vmul.f32 1.0, %v1099
        %v1101 = vmul.f32 %v1087, %v1098
        %v1102 = vmul.f32 %v1088, %v1100
        %1103 = vst [vmem:[%s325] sm:$0xff] %v1101
        %1104 = vst [vmem:[%s325 + $0x8] sm:$0xff] %v1102
        %s1105 = sand.u32 %s225, 1
        %s1106 = scalar_lea.sflag [#allocation3], %s1105
        %s1107 = sand.u32 %s225, 1
        %s1108 = smul.addr %s1107, 16
        %s1109 = scalar_lea.vmem [#allocation2], %s1108
        // Predicated region
        $region57: #{tpu_custom_call.1} parent=55 // pred_check
          %p1110 = pneg %p235
        $region58: #{tpu_custom_call.1} parent=55 // pred_check_branch
          %1112 = sbr.rel (%p1110) target = $region60
        $region59: #{tpu_custom_call.1} parent=55 // pred_region
          %s1114 = ssub.s32 256, 256
          %1115 = vsyncadd %s1106, %s1114
          %s1116 = smul.addr %s23, 2
          %s1117 = smul.addr %s1116, 128
          %s1118 = scalar_lea.hbm %s9, %s1117
          %s1120 = sshll.u32 %s1109, 4
          %s1121 = int_to_ptr.vmem [resolvable:$true] %s1120
          %1123 = dma.vmem_to_hbm [thread:$0]  %s1121, 256, %s1118, %s1106
        $region60: #{tpu_custom_call.1} parent=55 // pred_fallthru
          _
      $region56: #{tpu_custom_call.1} parent=5 // pred_fallthru
        _
      %p1124 = scmp.le.s32.totalorder 2, %s18
      // Predicated region
      $region61: #{tpu_custom_call.1} parent=5 // pred_check
        %p1125 = pneg %p1124
      $region62: #{tpu_custom_call.1} parent=5 // pred_check_branch
        %1127 = sbr.rel (%p1125) target = $region64
      $region63: #{tpu_custom_call.1} parent=5 // pred_region
        %s1128 = ssub.s32 %s18, 2
        // Predicated region
        $region65: #{tpu_custom_call.1} parent=63 // pred_check
          %p1129 = pneg %p241
        $region66: #{tpu_custom_call.1} parent=63 // pred_check_branch
          %1131 = sbr.rel (%p1129) target = $region68
        $region67: #{tpu_custom_call.1} parent=63 // pred_region
          %s1132 = sand.u32 %s226, 1
          %s1133 = scalar_lea.sflag [#allocation3], %s1132
          %s1134 = sand.u32 %s226, 1
          %s1135 = smul.addr %s1134, 16
          %s1136 = scalar_lea.vmem [#allocation2], %s1135
          %1137 = dma.done %s1133, 256
        $region68: #{tpu_custom_call.1} parent=63 // pred_fallthru
          _
      $region64: #{tpu_custom_call.1} parent=5 // pred_fallthru
        _
    $region6: #{tpu_custom_call.1} parent=1 // loop_footer
      %s22 = sadd.s32 1, %s18
    $region7: #{tpu_custom_call.1} parent=1 // loop_footer_branch
      %17 = sbr.rel target = $region3
    $region8: #{tpu_custom_call.1} parent=1 // loop_exit
      _
    %1138 = vsyncpa [#allocation3], 1
    %s1139 = scalar_lea.sflag [#allocation3], 1
    %1140 = vsyncpa %s1139, 1

</llo_original>
